<compile_context>
chip_gen: v7x
topology: tpu7x:2x2x1
jax: 0.10.0
libtpu: 0.0.40
codegen_flags: <defaults>
</compile_context>

<pallas_src>
import math
import functools

import jax
import jax.numpy as jnp
from jax.experimental import pallas as pl
from jax.experimental.pallas import tpu as pltpu

EPS = 1e-6  # clipping constant used by SigmoidFlow's logit step


def _dsf_kernel(params_ref, x_ref, x_out_ref, ld_out_ref, *, n_layers, hidden_dim):
    """One grid step: one batch row x one tile_n slice of positions, all layers.

    params_ref : (1, 3*H*L, TN)  -- hidden/param axis on sublanes, positions on lanes
    x_ref      : (1, 1, TN)
    x_out_ref  : (1, 1, TN)
    ld_out_ref : (1, 1, TN)      -- per-lane logdet contributions (reduced in wrapper)
    """
    H = hidden_dim
    x = x_ref[0]                                   # (1, TN)
    # TODO(synk): torch applies nan_to_num conditionally (with a logged warning) before
    # every layer; here the NaN->0 guard on x is a single unconditional pass (entry+exit).
    x = jnp.where(jnp.isnan(x), 0.0, x)

    ld = jnp.zeros(x.shape, jnp.float32)           # (1, TN) lane-wise partial logdet

    for i in range(n_layers):
        base = i * 3 * H
        a_pre = params_ref[0, base:base + H, :]                 # (H, TN)
        b = params_ref[0, base + H:base + 2 * H, :]             # (H, TN)
        pre_w = params_ref[0, base + 2 * H:base + 3 * H, :]     # (H, TN)

        # softplus(a_pre), numerically stable
        a = jnp.maximum(a_pre, 0.0) + jnp.log(1.0 + jnp.exp(-jnp.abs(a_pre)))

        # softmax over the hidden (sublane) axis, linear space (max-shifted)
        w_max = jnp.max(pre_w, axis=0, keepdims=True)
        w_e = jnp.exp(pre_w - w_max)
        w = w_e / jnp.sum(w_e, axis=0, keepdims=True)           # (H, TN)

        pre_sigm = a * x + b                                    # (H, TN), x bcast on sublanes

        # stable sigmoid: e = exp(-|p|), r = 1/(1+e); keep a shifted exp for the Jacobian
        z = -jnp.abs(pre_sigm)
        z_max = jnp.max(z, axis=0, keepdims=True)               # = -min_h |pre_sigm|
        es = jnp.exp(z - z_max)                                 # shifted, max term == 1
        e = es * jnp.exp(z_max)                                 # exp(-|pre_sigm|)
        r = 1.0 / (1.0 + e)                                     # sigmoid(|pre_sigm|)
        sigma = jnp.where(pre_sigm >= 0.0, r, 1.0 - r)

        x_pre = jnp.sum(w * sigma, axis=0, keepdims=True)       # (1, TN)

        # sigma*(1-sigma) = e*r^2 = exp(z_max)*es*r^2 ; factoring exp(z_max) out keeps
        # the Jacobian finite even when every |pre_sigm| is large (no logsumexp needed).
        jac = jnp.sum(w * a * es * (r * r), axis=0, keepdims=True)
        logj = z_max + jnp.log(jac)                             # (1, TN)
        ld = ld + logj

        if i < n_layers - 1:
            # logit transform with clipping (all layers except the last, no_logit=True)
            x_clip = x_pre * (1.0 - EPS) + EPS * 0.5
            log_xc = jnp.log(x_clip)
            log_1mxc = jnp.log(1.0 - x_clip)
            x = log_xc - log_1mxc
            ld = ld + (math.log(1.0 - EPS) - (log_xc + log_1mxc))
        else:
            x = x_pre

    # final NaN guard on x (matches the module's final nan_to_num; the logdet guard is
    # applied on the reduced value in the wrapper)
    x = jnp.where(jnp.isnan(x), 0.0, x)
    x_out_ref[0] = x
    ld_out_ref[0] = ld


def deep_sigmoid_flow(params_pn, x, *, n_layers, hidden_dim, tile_n=1024):
    """params_pn: [B, n_layers*3*hidden_dim, N] (param axis leading), x: [B, N].

    Returns (x_out [B, N], logdet [B]).  The producer should emit params with the
    param axis leading so no HBM-side transpose is needed.
    """
    B, N = x.shape
    P = n_layers * 3 * hidden_dim
    assert params_pn.shape == (B, P, N), params_pn.shape
    tile_n = min(tile_n, N)
    assert tile_n % 128 == 0, "tile_n must be a multiple of 128"
    assert N % tile_n == 0, "N must be a multiple of tile_n"

    x3 = x.reshape(B, 1, N)
    kernel = functools.partial(_dsf_kernel, n_layers=n_layers, hidden_dim=hidden_dim)

    x_out, ld_part = pl.pallas_call(
        kernel,
        out_shape=(jax.ShapeDtypeStruct((B, 1, N), jnp.float32),
                   jax.ShapeDtypeStruct((B, 1, N), jnp.float32)),
        grid_spec=pltpu.PrefetchScalarGridSpec(
            num_scalar_prefetch=0,
            grid=(B, N // tile_n),
            in_specs=[
                pl.BlockSpec((1, P, tile_n), lambda b, n: (b, 0, n)),   # params tile
                pl.BlockSpec((1, 1, tile_n), lambda b, n: (b, 0, n)),   # x tile
            ],
            out_specs=[
                pl.BlockSpec((1, 1, tile_n), lambda b, n: (b, 0, n)),   # x_out tile
                pl.BlockSpec((1, 1, tile_n), lambda b, n: (b, 0, n)),   # logdet partials
            ],
        ),
        compiler_params=pltpu.CompilerParams(
            dimension_semantics=("parallel", "parallel")),
    )(params_pn, x3)

    logdet = jnp.sum(ld_part[:, 0, :], axis=-1)
    logdet = jnp.where(jnp.isnan(logdet), 0.0, logdet)
    return x_out.reshape(B, N), logdet


def deep_sigmoid_flow_torch_layout(params, x, **kw):
    """Compatibility path for the torch layout params: [B, N, L*3*H].

    Prefer emitting params as [B, L*3*H, N] upstream; this transpose is a full extra
    HBM read+write of the dominant array.
    """
    return deep_sigmoid_flow(jnp.transpose(params, (0, 2, 1)), x, **kw)


# ----------------------------- pure-JAX reference ------------------------------------
def _softplus(x):
    return jnp.maximum(x, 0.0) + jnp.log(1.0 + jnp.exp(-jnp.abs(x)))


def _log_sigmoid(x):
    return -_softplus(-x)


def _logsumexp_last(x, keepdims=False):
    m = jnp.max(x, axis=-1, keepdims=True)
    out = m + jnp.log(jnp.sum(jnp.exp(x - m), axis=-1, keepdims=True))
    if not keepdims:
        out = jnp.squeeze(out, axis=-1)
    return out


def deep_sigmoid_flow_ref(params, x, *, n_layers, hidden_dim):
    """params: [B, N, L*3*H] (torch layout), x: [B, N]."""
    H = hidden_dim
    logdet = jnp.zeros((x.shape[0],), jnp.float32)
    for i in range(n_layers):
        lp = params[..., i * 3 * H:(i + 1) * 3 * H]
        a = _softplus(lp[..., :H])
        b = lp[..., H:2 * H]
        pre_w = lp[..., 2 * H:]
        log_w = pre_w - _logsumexp_last(pre_w, keepdims=True)
        w = jnp.exp(log_w)
        pre_sigm = a * x[..., None] + b
        x_pre = jnp.sum(w * jax.nn.sigmoid(pre_sigm), axis=-1)
        logj = _logsumexp_last(log_w + _log_sigmoid(pre_sigm) + _log_sigmoid(-pre_sigm)
                               + jnp.log(a))
        logdet = jnp.sum(logj, axis=-1) + logdet
        if i < n_layers - 1:
            xc = x_pre * (1.0 - EPS) + EPS * 0.5
            x = jnp.log(xc) - jnp.log(1.0 - xc)
            logdet = logdet + jnp.sum(
                math.log(1.0 - EPS) - (jnp.log(xc) + jnp.log(1.0 - xc)), axis=-1)
        else:
            x = x_pre
    return x, logdet


if __name__ == "__main__":
    # DeepSigmoidFlow(n_layers=3, hidden_dim=8) -> total_params_length = 72
    n_layers, hidden_dim = 3, 8
    B, S, T = 2, 4, 256                      # batch, series, timesteps
    N = S * T                                # 1024 positions -> 1 tile of 1024 per row
    P = n_layers * 3 * hidden_dim

    key = jax.random.PRNGKey(0)
    k_params, k_x = jax.random.split(key)
    # Producer emits params with the param axis leading ([B, P, N]) so the kernel needs
    # no HBM-side transpose.
    params_pn = jax.random.normal(k_params, (B, P, N), dtype=jnp.float32)
    x = jax.random.normal(k_x, (B, N), dtype=jnp.float32)

    x_out, logdet = deep_sigmoid_flow(params_pn, x,
                                      n_layers=n_layers, hidden_dim=hidden_dim)
    jax.block_until_ready((x_out, logdet))

    # Reference uses the torch layout [B, N, P]; transpose here is test-setup only.
    params_nlast = jnp.transpose(params_pn, (0, 2, 1))
    x_ref, ld_ref = deep_sigmoid_flow_ref(params_nlast, x,
                                          n_layers=n_layers, hidden_dim=hidden_dim)
    assert jnp.allclose(x_out, x_ref, atol=1e-4, rtol=1e-4), "x mismatch"
    assert jnp.allclose(logdet, ld_ref, atol=1e-2, rtol=1e-4), "logdet mismatch"

    print("KERNEL_OK")
</pallas_src>

<mosaic_0001>
module attributes {stable_mosaic.version = 11 : i64} {
  func.func @_dsf_kernel(%arg0: i32, %arg1: i32, %arg2: memref<1x72x1024xf32, #tpu.memory_space<vmem>>, %arg3: memref<1x1x1024xf32, #tpu.memory_space<vmem>>, %arg4: memref<1x1x1024xf32, #tpu.memory_space<vmem>>, %arg5: memref<1x1x1024xf32, #tpu.memory_space<vmem>>) attributes {dimension_semantics = [#tpu.dimension_semantics<parallel>, #tpu.dimension_semantics<parallel>], iteration_bounds = array<i64: 2, 1>, scalar_prefetch = 0 : i64, scratch_operands = 0 : i64, tpu.core_type = #tpu.core_type<tc>, window_params = [{transform_indices = @transform_0, window_bounds = array<i64: 1, 72, 1024>}, {transform_indices = @transform_1, window_bounds = array<i64: 1, 1, 1024>}, {transform_indices = @transform_2, window_bounds = array<i64: 1, 1, 1024>}, {transform_indices = @transform_3, window_bounds = array<i64: 1, 1, 1024>}]} {
    %c0 = arith.constant 0 : index
    %c0_0 = arith.constant 0 : index
    %c0_1 = arith.constant 0 : index
    %0 = vector.load %arg3[%c0, %c0_0, %c0_1] : memref<1x1x1024xf32, #tpu.memory_space<vmem>>, vector<1x1x1024xf32>
    %1 = vector.shape_cast %0 : vector<1x1x1024xf32> to vector<1x1024xf32>
    %2 = arith.cmpf one, %1, %1 : vector<1x1024xf32>
    %cst = arith.constant 0.000000e+00 : f32
    %3 = vector.broadcast %cst : f32 to vector<1x1024xf32>
    %4 = arith.select %2, %3, %1 : vector<1x1024xi1>, vector<1x1024xf32>
    %cst_2 = arith.constant 0.000000e+00 : f32
    %5 = vector.broadcast %cst_2 : f32 to vector<1x1024xf32>
    %c0_3 = arith.constant 0 : index
    %c0_4 = arith.constant 0 : index
    %c0_5 = arith.constant 0 : index
    %6 = vector.load %arg2[%c0_3, %c0_4, %c0_5] : memref<1x72x1024xf32, #tpu.memory_space<vmem>>, vector<1x8x1024xf32>
    %7 = vector.shape_cast %6 : vector<1x8x1024xf32> to vector<8x1024xf32>
    %c0_6 = arith.constant 0 : index
    %c8 = arith.constant 8 : index
    %c0_7 = arith.constant 0 : index
    %8 = vector.load %arg2[%c0_6, %c8, %c0_7] : memref<1x72x1024xf32, #tpu.memory_space<vmem>>, vector<1x8x1024xf32>
    %9 = vector.shape_cast %8 : vector<1x8x1024xf32> to vector<8x1024xf32>
    %c0_8 = arith.constant 0 : index
    %c16 = arith.constant 16 : index
    %c0_9 = arith.constant 0 : index
    %10 = vector.load %arg2[%c0_8, %c16, %c0_9] : memref<1x72x1024xf32, #tpu.memory_space<vmem>>, vector<1x8x1024xf32>
    %11 = vector.shape_cast %10 : vector<1x8x1024xf32> to vector<8x1024xf32>
    %cst_10 = arith.constant 0.000000e+00 : f32
    %12 = vector.broadcast %cst_10 : f32 to vector<8x1024xf32>
    %13 = arith.maximumf %7, %12 : vector<8x1024xf32>
    %14 = math.absf %7 : vector<8x1024xf32>
    %cst_11 = arith.constant 0.000000e+00 : f32
    %15 = vector.broadcast %cst_11 : f32 to vector<8x1024xf32>
    %16 = arith.subf %15, %14 : vector<8x1024xf32>
    %17 = math.exp %16 : vector<8x1024xf32>
    %cst_12 = arith.constant 1.000000e+00 : f32
    %18 = vector.broadcast %cst_12 : f32 to vector<8x1024xf32>
    %19 = arith.addf %18, %17 : vector<8x1024xf32>
    %20 = math.log %19 : vector<8x1024xf32>
    %21 = arith.addf %13, %20 : vector<8x1024xf32>
    %cst_13 = arith.constant dense<0xFF800000> : vector<1024xf32>
    %22 = vector.multi_reduction <maximumf>, %11, %cst_13 [0] : vector<8x1024xf32> to vector<1024xf32>
    %23 = vector.shape_cast %22 : vector<1024xf32> to vector<1x1024xf32>
    %24 = vector.broadcast %23 : vector<1x1024xf32> to vector<8x1024xf32>
    %25 = arith.subf %11, %24 : vector<8x1024xf32>
    %26 = math.exp %25 : vector<8x1024xf32>
    %cst_14 = arith.constant dense<0.000000e+00> : vector<1024xf32>
    %27 = vector.multi_reduction <add>, %26, %cst_14 [0] : vector<8x1024xf32> to vector<1024xf32>
    %28 = vector.shape_cast %27 : vector<1024xf32> to vector<1x1024xf32>
    %29 = vector.broadcast %28 : vector<1x1024xf32> to vector<8x1024xf32>
    %30 = arith.divf %26, %29 : vector<8x1024xf32>
    %31 = vector.broadcast %4 : vector<1x1024xf32> to vector<8x1024xf32>
    %32 = arith.mulf %21, %31 : vector<8x1024xf32>
    %33 = arith.addf %32, %9 : vector<8x1024xf32>
    %34 = math.absf %33 : vector<8x1024xf32>
    %cst_15 = arith.constant 0.000000e+00 : f32
    %35 = vector.broadcast %cst_15 : f32 to vector<8x1024xf32>
    %36 = arith.subf %35, %34 : vector<8x1024xf32>
    %cst_16 = arith.constant dense<0xFF800000> : vector<1024xf32>
    %37 = vector.multi_reduction <maximumf>, %36, %cst_16 [0] : vector<8x1024xf32> to vector<1024xf32>
    %38 = vector.shape_cast %37 : vector<1024xf32> to vector<1x1024xf32>
    %39 = vector.broadcast %38 : vector<1x1024xf32> to vector<8x1024xf32>
    %40 = arith.subf %36, %39 : vector<8x1024xf32>
    %41 = math.exp %40 : vector<8x1024xf32>
    %42 = math.exp %38 : vector<1x1024xf32>
    %43 = vector.broadcast %42 : vector<1x1024xf32> to vector<8x1024xf32>
    %44 = arith.mulf %41, %43 : vector<8x1024xf32>
    %cst_17 = arith.constant 1.000000e+00 : f32
    %45 = vector.broadcast %cst_17 : f32 to vector<8x1024xf32>
    %46 = arith.addf %45, %44 : vector<8x1024xf32>
    %cst_18 = arith.constant 1.000000e+00 : f32
    %47 = vector.broadcast %cst_18 : f32 to vector<8x1024xf32>
    %48 = arith.divf %47, %46 : vector<8x1024xf32>
    %cst_19 = arith.constant 0.000000e+00 : f32
    %49 = vector.broadcast %cst_19 : f32 to vector<8x1024xf32>
    %50 = arith.cmpf oge, %33, %49 : vector<8x1024xf32>
    %cst_20 = arith.constant 1.000000e+00 : f32
    %51 = vector.broadcast %cst_20 : f32 to vector<8x1024xf32>
    %52 = arith.subf %51, %48 : vector<8x1024xf32>
    %53 = arith.select %50, %48, %52 : vector<8x1024xi1>, vector<8x1024xf32>
    %54 = arith.mulf %30, %53 : vector<8x1024xf32>
    %cst_21 = arith.constant dense<0.000000e+00> : vector<1024xf32>
    %55 = vector.multi_reduction <add>, %54, %cst_21 [0] : vector<8x1024xf32> to vector<1024xf32>
    %56 = vector.shape_cast %55 : vector<1024xf32> to vector<1x1024xf32>
    %57 = arith.mulf %30, %21 : vector<8x1024xf32>
    %58 = arith.mulf %57, %41 : vector<8x1024xf32>
    %59 = arith.mulf %48, %48 : vector<8x1024xf32>
    %60 = arith.mulf %58, %59 : vector<8x1024xf32>
    %cst_22 = arith.constant dense<0.000000e+00> : vector<1024xf32>
    %61 = vector.multi_reduction <add>, %60, %cst_22 [0] : vector<8x1024xf32> to vector<1024xf32>
    %62 = vector.shape_cast %61 : vector<1024xf32> to vector<1x1024xf32>
    %63 = math.log %62 : vector<1x1024xf32>
    %64 = arith.addf %38, %63 : vector<1x1024xf32>
    %65 = arith.addf %5, %64 : vector<1x1024xf32>
    %cst_23 = arith.constant 0.999998986 : f32
    %66 = vector.broadcast %cst_23 : f32 to vector<1x1024xf32>
    %67 = arith.mulf %56, %66 : vector<1x1024xf32>
    %cst_24 = arith.constant 5.000000e-07 : f32
    %68 = vector.broadcast %cst_24 : f32 to vector<1x1024xf32>
    %69 = arith.addf %67, %68 : vector<1x1024xf32>
    %70 = math.log %69 : vector<1x1024xf32>
    %cst_25 = arith.constant 1.000000e+00 : f32
    %71 = vector.broadcast %cst_25 : f32 to vector<1x1024xf32>
    %72 = arith.subf %71, %69 : vector<1x1024xf32>
    %73 = math.log %72 : vector<1x1024xf32>
    %74 = arith.subf %70, %73 : vector<1x1024xf32>
    %75 = arith.addf %70, %73 : vector<1x1024xf32>
    %cst_26 = arith.constant -1.00000045E-6 : f32
    %76 = vector.broadcast %cst_26 : f32 to vector<1x1024xf32>
    %77 = arith.subf %76, %75 : vector<1x1024xf32>
    %78 = arith.addf %65, %77 : vector<1x1024xf32>
    %c0_27 = arith.constant 0 : index
    %c24 = arith.constant 24 : index
    %c0_28 = arith.constant 0 : index
    %79 = vector.load %arg2[%c0_27, %c24, %c0_28] : memref<1x72x1024xf32, #tpu.memory_space<vmem>>, vector<1x8x1024xf32>
    %80 = vector.shape_cast %79 : vector<1x8x1024xf32> to vector<8x1024xf32>
    %c0_29 = arith.constant 0 : index
    %c32 = arith.constant 32 : index
    %c0_30 = arith.constant 0 : index
    %81 = vector.load %arg2[%c0_29, %c32, %c0_30] : memref<1x72x1024xf32, #tpu.memory_space<vmem>>, vector<1x8x1024xf32>
    %82 = vector.shape_cast %81 : vector<1x8x1024xf32> to vector<8x1024xf32>
    %c0_31 = arith.constant 0 : index
    %c40 = arith.constant 40 : index
    %c0_32 = arith.constant 0 : index
    %83 = vector.load %arg2[%c0_31, %c40, %c0_32] : memref<1x72x1024xf32, #tpu.memory_space<vmem>>, vector<1x8x1024xf32>
    %84 = vector.shape_cast %83 : vector<1x8x1024xf32> to vector<8x1024xf32>
    %cst_33 = arith.constant 0.000000e+00 : f32
    %85 = vector.broadcast %cst_33 : f32 to vector<8x1024xf32>
    %86 = arith.maximumf %80, %85 : vector<8x1024xf32>
    %87 = math.absf %80 : vector<8x1024xf32>
    %cst_34 = arith.constant 0.000000e+00 : f32
    %88 = vector.broadcast %cst_34 : f32 to vector<8x1024xf32>
    %89 = arith.subf %88, %87 : vector<8x1024xf32>
    %90 = math.exp %89 : vector<8x1024xf32>
    %cst_35 = arith.constant 1.000000e+00 : f32
    %91 = vector.broadcast %cst_35 : f32 to vector<8x1024xf32>
    %92 = arith.addf %91, %90 : vector<8x1024xf32>
    %93 = math.log %92 : vector<8x1024xf32>
    %94 = arith.addf %86, %93 : vector<8x1024xf32>
    %cst_36 = arith.constant dense<0xFF800000> : vector<1024xf32>
    %95 = vector.multi_reduction <maximumf>, %84, %cst_36 [0] : vector<8x1024xf32> to vector<1024xf32>
    %96 = vector.shape_cast %95 : vector<1024xf32> to vector<1x1024xf32>
    %97 = vector.broadcast %96 : vector<1x1024xf32> to vector<8x1024xf32>
    %98 = arith.subf %84, %97 : vector<8x1024xf32>
    %99 = math.exp %98 : vector<8x1024xf32>
    %cst_37 = arith.constant dense<0.000000e+00> : vector<1024xf32>
    %100 = vector.multi_reduction <add>, %99, %cst_37 [0] : vector<8x1024xf32> to vector<1024xf32>
    %101 = vector.shape_cast %100 : vector<1024xf32> to vector<1x1024xf32>
    %102 = vector.broadcast %101 : vector<1x1024xf32> to vector<8x1024xf32>
    %103 = arith.divf %99, %102 : vector<8x1024xf32>
    %104 = vector.broadcast %74 : vector<1x1024xf32> to vector<8x1024xf32>
    %105 = arith.mulf %94, %104 : vector<8x1024xf32>
    %106 = arith.addf %105, %82 : vector<8x1024xf32>
    %107 = math.absf %106 : vector<8x1024xf32>
    %cst_38 = arith.constant 0.000000e+00 : f32
    %108 = vector.broadcast %cst_38 : f32 to vector<8x1024xf32>
    %109 = arith.subf %108, %107 : vector<8x1024xf32>
    %cst_39 = arith.constant dense<0xFF800000> : vector<1024xf32>
    %110 = vector.multi_reduction <maximumf>, %109, %cst_39 [0] : vector<8x1024xf32> to vector<1024xf32>
    %111 = vector.shape_cast %110 : vector<1024xf32> to vector<1x1024xf32>
    %112 = vector.broadcast %111 : vector<1x1024xf32> to vector<8x1024xf32>
    %113 = arith.subf %109, %112 : vector<8x1024xf32>
    %114 = math.exp %113 : vector<8x1024xf32>
    %115 = math.exp %111 : vector<1x1024xf32>
    %116 = vector.broadcast %115 : vector<1x1024xf32> to vector<8x1024xf32>
    %117 = arith.mulf %114, %116 : vector<8x1024xf32>
    %cst_40 = arith.constant 1.000000e+00 : f32
    %118 = vector.broadcast %cst_40 : f32 to vector<8x1024xf32>
    %119 = arith.addf %118, %117 : vector<8x1024xf32>
    %cst_41 = arith.constant 1.000000e+00 : f32
    %120 = vector.broadcast %cst_41 : f32 to vector<8x1024xf32>
    %121 = arith.divf %120, %119 : vector<8x1024xf32>
    %cst_42 = arith.constant 0.000000e+00 : f32
    %122 = vector.broadcast %cst_42 : f32 to vector<8x1024xf32>
    %123 = arith.cmpf oge, %106, %122 : vector<8x1024xf32>
    %cst_43 = arith.constant 1.000000e+00 : f32
    %124 = vector.broadcast %cst_43 : f32 to vector<8x1024xf32>
    %125 = arith.subf %124, %121 : vector<8x1024xf32>
    %126 = arith.select %123, %121, %125 : vector<8x1024xi1>, vector<8x1024xf32>
    %127 = arith.mulf %103, %126 : vector<8x1024xf32>
    %cst_44 = arith.constant dense<0.000000e+00> : vector<1024xf32>
    %128 = vector.multi_reduction <add>, %127, %cst_44 [0] : vector<8x1024xf32> to vector<1024xf32>
    %129 = vector.shape_cast %128 : vector<1024xf32> to vector<1x1024xf32>
    %130 = arith.mulf %103, %94 : vector<8x1024xf32>
    %131 = arith.mulf %130, %114 : vector<8x1024xf32>
    %132 = arith.mulf %121, %121 : vector<8x1024xf32>
    %133 = arith.mulf %131, %132 : vector<8x1024xf32>
    %cst_45 = arith.constant dense<0.000000e+00> : vector<1024xf32>
    %134 = vector.multi_reduction <add>, %133, %cst_45 [0] : vector<8x1024xf32> to vector<1024xf32>
    %135 = vector.shape_cast %134 : vector<1024xf32> to vector<1x1024xf32>
    %136 = math.log %135 : vector<1x1024xf32>
    %137 = arith.addf %111, %136 : vector<1x1024xf32>
    %138 = arith.addf %78, %137 : vector<1x1024xf32>
    %cst_46 = arith.constant 0.999998986 : f32
    %139 = vector.broadcast %cst_46 : f32 to vector<1x1024xf32>
    %140 = arith.mulf %129, %139 : vector<1x1024xf32>
    %cst_47 = arith.constant 5.000000e-07 : f32
    %141 = vector.broadcast %cst_47 : f32 to vector<1x1024xf32>
    %142 = arith.addf %140, %141 : vector<1x1024xf32>
    %143 = math.log %142 : vector<1x1024xf32>
    %cst_48 = arith.constant 1.000000e+00 : f32
    %144 = vector.broadcast %cst_48 : f32 to vector<1x1024xf32>
    %145 = arith.subf %144, %142 : vector<1x1024xf32>
    %146 = math.log %145 : vector<1x1024xf32>
    %147 = arith.subf %143, %146 : vector<1x1024xf32>
    %148 = arith.addf %143, %146 : vector<1x1024xf32>
    %cst_49 = arith.constant -1.00000045E-6 : f32
    %149 = vector.broadcast %cst_49 : f32 to vector<1x1024xf32>
    %150 = arith.subf %149, %148 : vector<1x1024xf32>
    %151 = arith.addf %138, %150 : vector<1x1024xf32>
    %c0_50 = arith.constant 0 : index
    %c48 = arith.constant 48 : index
    %c0_51 = arith.constant 0 : index
    %152 = vector.load %arg2[%c0_50, %c48, %c0_51] : memref<1x72x1024xf32, #tpu.memory_space<vmem>>, vector<1x8x1024xf32>
    %153 = vector.shape_cast %152 : vector<1x8x1024xf32> to vector<8x1024xf32>
    %c0_52 = arith.constant 0 : index
    %c56 = arith.constant 56 : index
    %c0_53 = arith.constant 0 : index
    %154 = vector.load %arg2[%c0_52, %c56, %c0_53] : memref<1x72x1024xf32, #tpu.memory_space<vmem>>, vector<1x8x1024xf32>
    %155 = vector.shape_cast %154 : vector<1x8x1024xf32> to vector<8x1024xf32>
    %c0_54 = arith.constant 0 : index
    %c64 = arith.constant 64 : index
    %c0_55 = arith.constant 0 : index
    %156 = vector.load %arg2[%c0_54, %c64, %c0_55] : memref<1x72x1024xf32, #tpu.memory_space<vmem>>, vector<1x8x1024xf32>
    %157 = vector.shape_cast %156 : vector<1x8x1024xf32> to vector<8x1024xf32>
    %cst_56 = arith.constant 0.000000e+00 : f32
    %158 = vector.broadcast %cst_56 : f32 to vector<8x1024xf32>
    %159 = arith.maximumf %153, %158 : vector<8x1024xf32>
    %160 = math.absf %153 : vector<8x1024xf32>
    %cst_57 = arith.constant 0.000000e+00 : f32
    %161 = vector.broadcast %cst_57 : f32 to vector<8x1024xf32>
    %162 = arith.subf %161, %160 : vector<8x1024xf32>
    %163 = math.exp %162 : vector<8x1024xf32>
    %cst_58 = arith.constant 1.000000e+00 : f32
    %164 = vector.broadcast %cst_58 : f32 to vector<8x1024xf32>
    %165 = arith.addf %164, %163 : vector<8x1024xf32>
    %166 = math.log %165 : vector<8x1024xf32>
    %167 = arith.addf %159, %166 : vector<8x1024xf32>
    %cst_59 = arith.constant dense<0xFF800000> : vector<1024xf32>
    %168 = vector.multi_reduction <maximumf>, %157, %cst_59 [0] : vector<8x1024xf32> to vector<1024xf32>
    %169 = vector.shape_cast %168 : vector<1024xf32> to vector<1x1024xf32>
    %170 = vector.broadcast %169 : vector<1x1024xf32> to vector<8x1024xf32>
    %171 = arith.subf %157, %170 : vector<8x1024xf32>
    %172 = math.exp %171 : vector<8x1024xf32>
    %cst_60 = arith.constant dense<0.000000e+00> : vector<1024xf32>
    %173 = vector.multi_reduction <add>, %172, %cst_60 [0] : vector<8x1024xf32> to vector<1024xf32>
    %174 = vector.shape_cast %173 : vector<1024xf32> to vector<1x1024xf32>
    %175 = vector.broadcast %174 : vector<1x1024xf32> to vector<8x1024xf32>
    %176 = arith.divf %172, %175 : vector<8x1024xf32>
    %177 = vector.broadcast %147 : vector<1x1024xf32> to vector<8x1024xf32>
    %178 = arith.mulf %167, %177 : vector<8x1024xf32>
    %179 = arith.addf %178, %155 : vector<8x1024xf32>
    %180 = math.absf %179 : vector<8x1024xf32>
    %cst_61 = arith.constant 0.000000e+00 : f32
    %181 = vector.broadcast %cst_61 : f32 to vector<8x1024xf32>
    %182 = arith.subf %181, %180 : vector<8x1024xf32>
    %cst_62 = arith.constant dense<0xFF800000> : vector<1024xf32>
    %183 = vector.multi_reduction <maximumf>, %182, %cst_62 [0] : vector<8x1024xf32> to vector<1024xf32>
    %184 = vector.shape_cast %183 : vector<1024xf32> to vector<1x1024xf32>
    %185 = vector.broadcast %184 : vector<1x1024xf32> to vector<8x1024xf32>
    %186 = arith.subf %182, %185 : vector<8x1024xf32>
    %187 = math.exp %186 : vector<8x1024xf32>
    %188 = math.exp %184 : vector<1x1024xf32>
    %189 = vector.broadcast %188 : vector<1x1024xf32> to vector<8x1024xf32>
    %190 = arith.mulf %187, %189 : vector<8x1024xf32>
    %cst_63 = arith.constant 1.000000e+00 : f32
    %191 = vector.broadcast %cst_63 : f32 to vector<8x1024xf32>
    %192 = arith.addf %191, %190 : vector<8x1024xf32>
    %cst_64 = arith.constant 1.000000e+00 : f32
    %193 = vector.broadcast %cst_64 : f32 to vector<8x1024xf32>
    %194 = arith.divf %193, %192 : vector<8x1024xf32>
    %cst_65 = arith.constant 0.000000e+00 : f32
    %195 = vector.broadcast %cst_65 : f32 to vector<8x1024xf32>
    %196 = arith.cmpf oge, %179, %195 : vector<8x1024xf32>
    %cst_66 = arith.constant 1.000000e+00 : f32
    %197 = vector.broadcast %cst_66 : f32 to vector<8x1024xf32>
    %198 = arith.subf %197, %194 : vector<8x1024xf32>
    %199 = arith.select %196, %194, %198 : vector<8x1024xi1>, vector<8x1024xf32>
    %200 = arith.mulf %176, %199 : vector<8x1024xf32>
    %cst_67 = arith.constant dense<0.000000e+00> : vector<1024xf32>
    %201 = vector.multi_reduction <add>, %200, %cst_67 [0] : vector<8x1024xf32> to vector<1024xf32>
    %202 = vector.shape_cast %201 : vector<1024xf32> to vector<1x1024xf32>
    %203 = arith.mulf %176, %167 : vector<8x1024xf32>
    %204 = arith.mulf %203, %187 : vector<8x1024xf32>
    %205 = arith.mulf %194, %194 : vector<8x1024xf32>
    %206 = arith.mulf %204, %205 : vector<8x1024xf32>
    %cst_68 = arith.constant dense<0.000000e+00> : vector<1024xf32>
    %207 = vector.multi_reduction <add>, %206, %cst_68 [0] : vector<8x1024xf32> to vector<1024xf32>
    %208 = vector.shape_cast %207 : vector<1024xf32> to vector<1x1024xf32>
    %209 = math.log %208 : vector<1x1024xf32>
    %210 = arith.addf %184, %209 : vector<1x1024xf32>
    %211 = arith.addf %151, %210 : vector<1x1024xf32>
    %212 = arith.cmpf one, %202, %202 : vector<1x1024xf32>
    %cst_69 = arith.constant 0.000000e+00 : f32
    %213 = vector.broadcast %cst_69 : f32 to vector<1x1024xf32>
    %214 = arith.select %212, %213, %202 : vector<1x1024xi1>, vector<1x1024xf32>
    %c0_70 = arith.constant 0 : index
    %c0_71 = arith.constant 0 : index
    %c0_72 = arith.constant 0 : index
    %215 = vector.load %arg4[%c0_70, %c0_71, %c0_72] : memref<1x1x1024xf32, #tpu.memory_space<vmem>>, vector<1x1x1024xf32>
    %216 = vector.shape_cast %215 : vector<1x1x1024xf32> to vector<1x1024xf32>
    %217 = vector.shape_cast %214 : vector<1x1024xf32> to vector<1x1x1024xf32>
    tpu.vector_store %arg4[%c0_70, %c0_71, %c0_72], %217 {strides = array<i32>} : memref<1x1x1024xf32, #tpu.memory_space<vmem>>, vector<1x1x1024xf32>,
    %c0_73 = arith.constant 0 : index
    %c0_74 = arith.constant 0 : index
    %c0_75 = arith.constant 0 : index
    %218 = vector.load %arg5[%c0_73, %c0_74, %c0_75] : memref<1x1x1024xf32, #tpu.memory_space<vmem>>, vector<1x1x1024xf32>
    %219 = vector.shape_cast %218 : vector<1x1x1024xf32> to vector<1x1024xf32>
    %220 = vector.shape_cast %211 : vector<1x1024xf32> to vector<1x1x1024xf32>
    tpu.vector_store %arg5[%c0_73, %c0_74, %c0_75], %220 {strides = array<i32>} : memref<1x1x1024xf32, #tpu.memory_space<vmem>>, vector<1x1x1024xf32>,
    return
  }
  func.func @transform_0(%arg0: i32, %arg1: i32) -> (i32, i32, i32) {
    %c0_i32 = arith.constant 0 : i32
    %c0_i32_0 = arith.constant 0 : i32
    return %arg0, %c0_i32, %arg1 : i32, i32, i32
  }
  func.func @transform_1(%arg0: i32, %arg1: i32) -> (i32, i32, i32) {
    %c0_i32 = arith.constant 0 : i32
    %c0_i32_0 = arith.constant 0 : i32
    return %arg0, %c0_i32, %arg1 : i32, i32, i32
  }
  func.func @transform_2(%arg0: i32, %arg1: i32) -> (i32, i32, i32) {
    %c0_i32 = arith.constant 0 : i32
    %c0_i32_0 = arith.constant 0 : i32
    return %arg0, %c0_i32, %arg1 : i32, i32, i32
  }
  func.func @transform_3(%arg0: i32, %arg1: i32) -> (i32, i32, i32) {
    %c0_i32 = arith.constant 0 : i32
    %c0_i32_0 = arith.constant 0 : i32
    return %arg0, %c0_i32, %arg1 : i32, i32, i32
  }
}

</mosaic_0001>

<llo_original>
// kernel: tpu_custom_call.1
$region0: #{tpu_custom_call.1}
  #allocation0 [shape = 'u32[]', space=smem, size = 0x4, offset = 0x4, fixed_abs, tag = 'smem constant byte address 0x4 - core index']
  #allocation1 [shape = 'u32[144,128]{1,0:T(1,128)}', space=vmem, size = 0x12000, scoped, tag = 'internal scratch']
  %s0 = inlined_call_operand.hbm [shape: f32[2,72,1024], index: 0, kind: input, shape index: {}]
  %s1 = inlined_call_operand.hbm [shape: f32[2,1,1024], index: 1, kind: input, shape index: {}]
  %s2 = inlined_call_operand.hbm [shape: f32[2,1,1024], index: 2, kind: output, shape index: {0}]
  %s3 = inlined_call_operand.hbm [shape: f32[2,1,1024], index: 3, kind: output, shape index: {1}]
  %4 = xla_tuple %s2, %s3
  %s5 = sld [smem:[#allocation0]]
  $region57: #{tpu_custom_call.1} parent=0
    _
  %s7 = ssub.s32 1, %s5
  %s8 = scalar_select 0, %s7, %s5
  $region1: #{tpu_custom_call.1} parent=0
    #allocation2 [shape = 'u8[589824]{0}', space=vmem, size = 0x90000, scoped, tag = 'input window, operand 0']
    #allocation3 [shape = 's32[2]{0}', space=sflag, size = 0x8, scoped, tag = 'scoped memory for tpu_custom_call.1']
    #allocation4 [shape = 's32[2]{0}', space=sflag, size = 0x8, scoped, tag = 'scoped memory for tpu_custom_call.1']
    #allocation5 [shape = 'u8[8192]{0}', space=vmem, size = 0x2000, scoped, tag = 'input window, operand 1']
    #allocation6 [shape = 's32[2]{0}', space=sflag, size = 0x8, scoped, tag = 'scoped memory for tpu_custom_call.1']
    #allocation7 [shape = 'u8[8192]{0}', space=vmem, size = 0x2000, scoped, tag = 'output window, operand 0']
    #allocation8 [shape = 'u8[8192]{0}', space=vmem, size = 0x2000, scoped, tag = 'output window, operand 1']
    #allocation9 [shape = 's32[2]{0}', space=sflag, size = 0x8, scoped, tag = 'scoped memory for tpu_custom_call.1']
    %9 = vsyncpa [#allocation3], 0
    %s10 = scalar_lea.sflag [#allocation3], 1
    %11 = vsyncpa %s10, 0
    %12 = vsyncpa [#allocation6], 0
    %s13 = scalar_lea.sflag [#allocation6], 1
    %14 = vsyncpa %s13, 0
    %15 = vsyncpa [#allocation4], 0
    %s16 = scalar_lea.sflag [#allocation4], 1
    %17 = vsyncpa %s16, 0
    %18 = vsyncpa [#allocation9], 0
    %s19 = scalar_lea.sflag [#allocation9], 1
    %20 = vsyncpa %s19, 0
    loop: start=0, step=1, limit=4
    $region2: #{tpu_custom_call.1} parent=1 // loop_pre_header
      _
    $region3: #{tpu_custom_call.1} parent=1 // loop_header
      %s22 = sphi 0, %s26
      %p23 = scmp.ge.s32.totalorder %s22, 4
      %s29 = sphi 0, %s41
      %s30 = sphi 0, %s37
      %s31 = sphi 0, %s29
      %s32 = sphi 0, %s30
      %s33 = sphi 0, %s31
      %s34 = sphi 0, %s32
      %s46 = sphi 0, %s48
      %s49 = sphi 0, %s46
      %s50 = sphi 0, %s49
      %s66 = sphi 0, %s50
      %s74 = sphi 0, %s76
      %s77 = sphi 0, %s74
      %s78 = sphi 0, %s77
      %s94 = sphi 0, %s78
      %s102 = sphi 0, %s104
      %s105 = sphi 0, %s102
      %s106 = sphi 0, %s105
      %s122 = sphi 0, %s106
      %s130 = sphi 0, %s132
      %s133 = sphi 0, %s130
      %s134 = sphi 0, %s133
      %s150 = sphi 0, %s134
    $region4: #{tpu_custom_call.1} parent=1 // loop_header_branch
      %25 = sbr.rel (%p23) target = $region8
    $region5: #{tpu_custom_call.1} parent=1 // loop_body
      %s27 = ssub.s32 %s22, 1
      %s28 = ssub.s32 %s22, 2
      %s35 = sadd.s32 1, %s30
      %p36 = scmp.ge.s32.totalorder %s35, 1
      %s37 = scalar_select %p36, 0, %s35
      %s38 = sadd.s32 1, %s29
      %s39 = scalar_select %p36, %s38, %s29
      %p40 = scmp.ge.s32.totalorder %s39, 2
      %s41 = scalar_select %p40, 0, %s39
      %s42 = ssub.s32 %s29, %s41
      %s43 = ssub.s32 %s30, %s37
      %s44 = sor.u32 %s42, %s43
      %p45 = scmp.eq.s32.totalorder %s44, 0
      %s47 = sadd.s32 %s46, 1
      %s48 = scalar_select %p45, %s46, %s47
      %p51 = pneg %p45
      %p52 = scmp.eq.s32.totalorder %s22, 1
      %p53 = por %p51, %p52
      %p54 = scmp.ne.s32.totalorder %s46, %s49
      %p55 = scmp.eq.s32.totalorder %s22, 0
      %p56 = por %p54, %p55
      %p57 = scmp.ne.s32.totalorder %s46, %s49
      %p58 = scmp.eq.s32.totalorder %s27, 1
      %p59 = por %p57, %p58
      %p60 = scmp.ne.s32.totalorder %s49, %s50
      %p61 = scmp.eq.s32.totalorder %s27, 0
      %p62 = por %p60, %p61
      %p63 = scmp.ne.s32.totalorder %s49, %s50
      %p64 = scmp.eq.s32.totalorder %s28, 1
      %p65 = por %p63, %p64
      %p67 = scmp.ne.s32.totalorder %s50, %s66
      %p68 = scmp.eq.s32.totalorder %s28, 0
      %p69 = por %p67, %p68
      %s70 = ssub.s32 %s29, %s41
      %s71 = ssub.s32 %s30, %s37
      %s72 = sor.u32 %s70, %s71
      %p73 = scmp.eq.s32.totalorder %s72, 0
      %s75 = sadd.s32 %s74, 1
      %s76 = scalar_select %p73, %s74, %s75
      %p79 = pneg %p73
      %p80 = scmp.eq.s32.totalorder %s22, 1
      %p81 = por %p79, %p80
      %p82 = scmp.ne.s32.totalorder %s74, %s77
      %p83 = scmp.eq.s32.totalorder %s22, 0
      %p84 = por %p82, %p83
      %p85 = scmp.ne.s32.totalorder %s74, %s77
      %p86 = scmp.eq.s32.totalorder %s27, 1
      %p87 = por %p85, %p86
      %p88 = scmp.ne.s32.totalorder %s77, %s78
      %p89 = scmp.eq.s32.totalorder %s27, 0
      %p90 = por %p88, %p89
      %p91 = scmp.ne.s32.totalorder %s77, %s78
      %p92 = scmp.eq.s32.totalorder %s28, 1
      %p93 = por %p91, %p92
      %p95 = scmp.ne.s32.totalorder %s78, %s94
      %p96 = scmp.eq.s32.totalorder %s28, 0
      %p97 = por %p95, %p96
      %s98 = ssub.s32 %s29, %s41
      %s99 = ssub.s32 %s30, %s37
      %s100 = sor.u32 %s98, %s99
      %p101 = scmp.eq.s32.totalorder %s100, 0
      %s103 = sadd.s32 %s102, 1
      %s104 = scalar_select %p101, %s102, %s103
      %p107 = pneg %p101
      %p108 = scmp.eq.s32.totalorder %s22, 1
      %p109 = por %p107, %p108
      %p110 = scmp.ne.s32.totalorder %s102, %s105
      %p111 = scmp.eq.s32.totalorder %s22, 0
      %p112 = por %p110, %p111
      %p113 = scmp.ne.s32.totalorder %s102, %s105
      %p114 = scmp.eq.s32.totalorder %s27, 1
      %p115 = por %p113, %p114
      %p116 = scmp.ne.s32.totalorder %s105, %s106
      %p117 = scmp.eq.s32.totalorder %s27, 0
      %p118 = por %p116, %p117
      %p119 = scmp.ne.s32.totalorder %s105, %s106
      %p120 = scmp.eq.s32.totalorder %s28, 1
      %p121 = por %p119, %p120
      %p123 = scmp.ne.s32.totalorder %s106, %s122
      %p124 = scmp.eq.s32.totalorder %s28, 0
      %p125 = por %p123, %p124
      %s126 = ssub.s32 %s29, %s41
      %s127 = ssub.s32 %s30, %s37
      %s128 = sor.u32 %s126, %s127
      %p129 = scmp.eq.s32.totalorder %s128, 0
      %s131 = sadd.s32 %s130, 1
      %s132 = scalar_select %p129, %s130, %s131
      %p135 = pneg %p129
      %p136 = scmp.eq.s32.totalorder %s22, 1
      %p137 = por %p135, %p136
      %p138 = scmp.ne.s32.totalorder %s130, %s133
      %p139 = scmp.eq.s32.totalorder %s22, 0
      %p140 = por %p138, %p139
      %p141 = scmp.ne.s32.totalorder %s130, %s133
      %p142 = scmp.eq.s32.totalorder %s27, 1
      %p143 = por %p141, %p142
      %p144 = scmp.ne.s32.totalorder %s133, %s134
      %p145 = scmp.eq.s32.totalorder %s27, 0
      %p146 = por %p144, %p145
      %p147 = scmp.ne.s32.totalorder %s133, %s134
      %p148 = scmp.eq.s32.totalorder %s28, 1
      %p149 = por %p147, %p148
      %p151 = scmp.ne.s32.totalorder %s134, %s150
      %p152 = scmp.eq.s32.totalorder %s28, 0
      %p153 = por %p151, %p152
      %p154 = scmp.le.s32.totalorder 1, %s22
      %p155 = scmp.lt.s32.totalorder %s22, 3
      %p156 = pnand %p154, %p155
      %p157 = pneg %p156
      // Predicated region
      $region9: #{tpu_custom_call.1} parent=5 // pred_check
        _
      $region10: #{tpu_custom_call.1} parent=5 // pred_check_branch
        %159 = sbr.rel (%p156) target = $region12
      $region11: #{tpu_custom_call.1} parent=5 // pred_region
        %s160 = ssub.s32 %s22, 1
      $region12: #{tpu_custom_call.1} parent=5 // pred_fallthru
        _
      %p161 = scmp.lt.s32.totalorder %s22, 2
      // Predicated region
      $region13: #{tpu_custom_call.1} parent=5 // pred_check
        %p162 = pneg %p161
      $region14: #{tpu_custom_call.1} parent=5 // pred_check_branch
        %164 = sbr.rel (%p162) target = $region16
      $region15: #{tpu_custom_call.1} parent=5 // pred_region
        // Predicated region
        $region17: #{tpu_custom_call.1} parent=15 // pred_check
          %p165 = pneg %p56
        $region18: #{tpu_custom_call.1} parent=15 // pred_check_branch
          %167 = sbr.rel (%p165) target = $region20
        $region19: #{tpu_custom_call.1} parent=15 // pred_region
          %s168 = sand.u32 %s46, 1
          %s169 = scalar_lea.sflag [#allocation3], %s168
          %s170 = sand.u32 %s46, 1
          %s171 = smul.addr %s170, 576
          %s172 = scalar_lea.vmem [#allocation2], %s171
          %s173 = smul.u32 8, %s30
          %s175 = ssub.s32 9216, 9216
          %176 = vsyncadd %s169, %s175
          %s177 = smul.addr %s29, 72
          %s178 = sadd.s32 %s173, %s177
          %s179 = smul.addr %s178, 128
          %s180 = scalar_lea.hbm %s0, %s179
          %s181 = sshll.u32 %s172, 4
          %s182 = int_to_ptr.vmem [resolvable:$true] %s181
          %187 = dma.hbm_to_vmem [thread:$0]  %s180, 9216, %s182, %s169, 1024, 1024, 64
        $region20: #{tpu_custom_call.1} parent=15 // pred_fallthru
          _
        // Predicated region
        $region21: #{tpu_custom_call.1} parent=15 // pred_check
          %p188 = pneg %p84
        $region22: #{tpu_custom_call.1} parent=15 // pred_check_branch
          %190 = sbr.rel (%p188) target = $region24
        $region23: #{tpu_custom_call.1} parent=15 // pred_region
          %s191 = sand.u32 %s74, 1
          %s192 = scalar_lea.sflag [#allocation6], %s191
          %s193 = sand.u32 %s74, 1
          %s194 = smul.addr %s193, 8
          %s195 = scalar_lea.vmem [#allocation5], %s194
          %s196 = smul.u32 8, %s30
          %s198 = ssub.s32 128, 128
          %199 = vsyncadd %s192, %s198
          %s200 = smul.addr %s29, 8
          %s201 = sadd.s32 %s196, %s200
          %s202 = smul.addr %s201, 16
          %s203 = scalar_lea.hbm %s1, %s202
          %s205 = sshll.u32 %s195, 4
          %s206 = int_to_ptr.vmem [resolvable:$true] %s205
          %208 = dma.hbm_to_vmem [thread:$0]  %s203, 128, %s206, %s192
        $region24: #{tpu_custom_call.1} parent=15 // pred_fallthru
          _
      $region16: #{tpu_custom_call.1} parent=5 // pred_fallthru
        _
      %p209 = scmp.le.s32.totalorder 1, %s22
      %p210 = scmp.lt.s32.totalorder %s22, 3
      %p211 = pnand %p209, %p210
      %p212 = pneg %p211
      // Predicated region
      $region25: #{tpu_custom_call.1} parent=5 // pred_check
        _
      $region26: #{tpu_custom_call.1} parent=5 // pred_check_branch
        %214 = sbr.rel (%p211) target = $region28
      $region27: #{tpu_custom_call.1} parent=5 // pred_region
        %s215 = ssub.s32 %s22, 1
        %s216 = sand.u32 %s49, 1
        %s217 = scalar_lea.sflag [#allocation3], %s216
        %s218 = sand.u32 %s49, 1
        %s219 = smul.addr %s218, 576
        %s220 = scalar_lea.vmem [#allocation2], %s219
        // Predicated region
        $region29: #{tpu_custom_call.1} parent=27 // pred_check
          %p221 = pneg %p62
        $region30: #{tpu_custom_call.1} parent=27 // pred_check_branch
          %223 = sbr.rel (%p221) target = $region32
        $region31: #{tpu_custom_call.1} parent=27 // pred_region
          %224 = dma.done %s217, 9216
        $region32: #{tpu_custom_call.1} parent=27 // pred_fallthru
          _
        %s225 = sand.u32 %s77, 1
        %s226 = scalar_lea.sflag [#allocation6], %s225
        %s227 = sand.u32 %s77, 1
        %s228 = smul.addr %s227, 8
        %s229 = scalar_lea.vmem [#allocation5], %s228
        // Predicated region
        $region33: #{tpu_custom_call.1} parent=27 // pred_check
          %p230 = pneg %p90
        $region34: #{tpu_custom_call.1} parent=27 // pred_check_branch
          %232 = sbr.rel (%p230) target = $region36
        $region35: #{tpu_custom_call.1} parent=27 // pred_region
          %233 = dma.done %s226, 128
        $region36: #{tpu_custom_call.1} parent=27 // pred_fallthru
          _
        %s234 = sand.u32 %s49, 1
        %s235 = scalar_lea.sflag [#allocation3], %s234
        %s236 = sand.u32 %s49, 1
        %s237 = smul.addr %s236, 576
        %s238 = scalar_lea.vmem [#allocation2], %s237
        %p239 = pneg %p62
        %p240 = pneg %p59
        %s241 = sand.u32 %s77, 1
        %s242 = scalar_lea.sflag [#allocation6], %s241
        %s243 = sand.u32 %s77, 1
        %s244 = smul.addr %s243, 8
        %s245 = scalar_lea.vmem [#allocation5], %s244
        %p246 = pneg %p90
        %p247 = pneg %p87
        %p248 = pneg %p118
        %p249 = pneg %p115
        %s250 = sand.u32 %s105, 1
        %s251 = scalar_lea.sflag [#allocation4], %s250
        %s252 = sand.u32 %s105, 1
        %s253 = smul.addr %s252, 8
        %s254 = scalar_lea.vmem [#allocation7], %s253
        %p255 = pneg %p146
        %p256 = pneg %p143
        %s257 = sand.u32 %s133, 1
        %s258 = scalar_lea.sflag [#allocation9], %s257
        %s259 = sand.u32 %s133, 1
        %s260 = smul.addr %s259, 8
        %s261 = scalar_lea.vmem [#allocation8], %s260
        %s262 = smul.u32 8, %s32
        %s263 = smul.u32 8, %s32
        %s264 = smul.u32 8, %s32
        %s265 = smul.u32 8, %s32
        %v266 = vld [vmem:[%s229] sm:$0xff]
        %vm267 = vcmp.ne.f32.partialorder %v266, %v266
        %v268 = vsel %vm267, 0.0, %v266
        %v269 = vld [vmem:[%s220] sm:$0xff]
        %v270 = vld [vmem:[%s220 + $0x8] sm:$0xff]
        %v271 = vld [vmem:[%s220 + $0x10] sm:$0xff]
        %v272 = vld [vmem:[%s220 + $0x18] sm:$0xff]
        %v273 = vld [vmem:[%s220 + $0x20] sm:$0xff]
        %v274 = vld [vmem:[%s220 + $0x28] sm:$0xff]
        %v275 = vld [vmem:[%s220 + $0x30] sm:$0xff]
        %v276 = vld [vmem:[%s220 + $0x38] sm:$0xff]
        %v277 = vld [vmem:[%s220 + $0x40] sm:$0xff]
        %v278 = vld [vmem:[%s220 + $0x48] sm:$0xff]
        %v279 = vld [vmem:[%s220 + $0x50] sm:$0xff]
        %v280 = vld [vmem:[%s220 + $0x58] sm:$0xff]
        %v281 = vld [vmem:[%s220 + $0x60] sm:$0xff]
        %v282 = vld [vmem:[%s220 + $0x68] sm:$0xff]
        %v283 = vld [vmem:[%s220 + $0x70] sm:$0xff]
        %v284 = vld [vmem:[%s220 + $0x78] sm:$0xff]
        %v285 = vld [vmem:[%s220 + $0x80] sm:$0xff]
        %v286 = vld [vmem:[%s220 + $0x88] sm:$0xff]
        %v287 = vld [vmem:[%s220 + $0x90] sm:$0xff]
        %v288 = vld [vmem:[%s220 + $0x98] sm:$0xff]
        %v289 = vld [vmem:[%s220 + $0xa0] sm:$0xff]
        %v290 = vld [vmem:[%s220 + $0xa8] sm:$0xff]
        %v291 = vld [vmem:[%s220 + $0xb0] sm:$0xff]
        %v292 = vld [vmem:[%s220 + $0xb8] sm:$0xff]
        %v293 = vmax.f32 %v269, 0.0
        %v294 = vmax.f32 %v270, 0.0
        %v295 = vmax.f32 %v271, 0.0
        %v296 = vmax.f32 %v272, 0.0
        %v297 = vmax.f32 %v273, 0.0
        %v298 = vmax.f32 %v274, 0.0
        %v299 = vmax.f32 %v275, 0.0
        %v300 = vmax.f32 %v276, 0.0
        %v301 = vand.u32 2147483647, %v269
        %v302 = vand.u32 2147483647, %v270
        %v303 = vand.u32 2147483647, %v271
        %v304 = vand.u32 2147483647, %v272
        %v305 = vand.u32 2147483647, %v273
        %v306 = vand.u32 2147483647, %v274
        %v307 = vand.u32 2147483647, %v275
        %v308 = vand.u32 2147483647, %v276
        %v309 = vsub.f32 0.0, %v301
        %v310 = vsub.f32 0.0, %v302
        %v311 = vsub.f32 0.0, %v303
        %v312 = vsub.f32 0.0, %v304
        %v313 = vsub.f32 0.0, %v305
        %v314 = vsub.f32 0.0, %v306
        %v315 = vsub.f32 0.0, %v307
        %v316 = vsub.f32 0.0, %v308
        %v317 = vmul.f32 %v309, 1.442695
        %v318 = vpow.pop %v317
        %v319 = vmul.f32 %v310, 1.442695
        %v320 = vpow.pop %v319
        %v321 = vmul.f32 %v311, 1.442695
        %v322 = vpow.pop %v321
        %v323 = vmul.f32 %v312, 1.442695
        %v324 = vpow.pop %v323
        %v325 = vmul.f32 %v313, 1.442695
        %v326 = vpow.pop %v325
        %v327 = vmul.f32 %v314, 1.442695
        %v328 = vpow.pop %v327
        %v329 = vmul.f32 %v315, 1.442695
        %v330 = vpow.pop %v329
        %v331 = vmul.f32 %v316, 1.442695
        %v332 = vpow.pop %v331
        %v333 = vadd.f32 %v318, 1.0
        %v334 = vadd.f32 %v320, 1.0
        %v335 = vadd.f32 %v322, 1.0
        %v336 = vadd.f32 %v324, 1.0
        %v337 = vadd.f32 %v326, 1.0
        %v338 = vadd.f32 %v328, 1.0
        %v339 = vadd.f32 %v330, 1.0
        %v340 = vadd.f32 %v332, 1.0
        %v341 = vlog2.pop %v333
        %v342 = vmul.f32 %v341, 0.6931472
        %v343 = vlog2.pop %v334
        %v344 = vmul.f32 %v343, 0.6931472
        %v345 = vlog2.pop %v335
        %v346 = vmul.f32 %v345, 0.6931472
        %v347 = vlog2.pop %v336
        %v348 = vmul.f32 %v347, 0.6931472
        %v349 = vlog2.pop %v337
        %v350 = vmul.f32 %v349, 0.6931472
        %v351 = vlog2.pop %v338
        %v352 = vmul.f32 %v351, 0.6931472
        %v353 = vlog2.pop %v339
        %v354 = vmul.f32 %v353, 0.6931472
        %v355 = vlog2.pop %v340
        %v356 = vmul.f32 %v355, 0.6931472
        %v357 = vadd.f32 %v293, %v342
        %v358 = vadd.f32 %v294, %v344
        %v359 = vadd.f32 %v295, %v346
        %v360 = vadd.f32 %v296, %v348
        %v361 = vadd.f32 %v297, %v350
        %v362 = vadd.f32 %v298, %v352
        %v363 = vadd.f32 %v299, %v354
        %v364 = vadd.f32 %v300, %v356
        %v365 = vrot.slane %v285, 4
        %v366 = vmax.f32 %v285, %v365
        %v367 = vrot.slane %v366, 2
        %v368 = vmax.f32 %v366, %v367
        %v369 = vrot.slane %v368, 1
        %v370 = vmax.f32 %v368, %v369
        %v371 = vrot.slane %v286, 4
        %v372 = vmax.f32 %v286, %v371
        %v373 = vrot.slane %v372, 2
        %v374 = vmax.f32 %v372, %v373
        %v375 = vrot.slane %v374, 1
        %v376 = vmax.f32 %v374, %v375
        %v377 = vrot.slane %v287, 4
        %v378 = vmax.f32 %v287, %v377
        %v379 = vrot.slane %v378, 2
        %v380 = vmax.f32 %v378, %v379
        %v381 = vrot.slane %v380, 1
        %v382 = vmax.f32 %v380, %v381
        %v383 = vrot.slane %v288, 4
        %v384 = vmax.f32 %v288, %v383
        %v385 = vrot.slane %v384, 2
        %v386 = vmax.f32 %v384, %v385
        %v387 = vrot.slane %v386, 1
        %v388 = vmax.f32 %v386, %v387
        %v389 = vrot.slane %v289, 4
        %v390 = vmax.f32 %v289, %v389
        %v391 = vrot.slane %v390, 2
        %v392 = vmax.f32 %v390, %v391
        %v393 = vrot.slane %v392, 1
        %v394 = vmax.f32 %v392, %v393
        %v395 = vrot.slane %v290, 4
        %v396 = vmax.f32 %v290, %v395
        %v397 = vrot.slane %v396, 2
        %v398 = vmax.f32 %v396, %v397
        %v399 = vrot.slane %v398, 1
        %v400 = vmax.f32 %v398, %v399
        %v401 = vrot.slane %v291, 4
        %v402 = vmax.f32 %v291, %v401
        %v403 = vrot.slane %v402, 2
        %v404 = vmax.f32 %v402, %v403
        %v405 = vrot.slane %v404, 1
        %v406 = vmax.f32 %v404, %v405
        %v407 = vrot.slane %v292, 4
        %v408 = vmax.f32 %v292, %v407
        %v409 = vrot.slane %v408, 2
        %v410 = vmax.f32 %v408, %v409
        %v411 = vrot.slane %v410, 1
        %v412 = vmax.f32 %v410, %v411
        %v413 = vsub.f32 %v285, %v370
        %v414 = vsub.f32 %v286, %v376
        %v415 = vsub.f32 %v287, %v382
        %v416 = vsub.f32 %v288, %v388
        %v417 = vsub.f32 %v289, %v394
        %v418 = vsub.f32 %v290, %v400
        %v419 = vsub.f32 %v291, %v406
        %v420 = vsub.f32 %v292, %v412
        %v421 = vmul.f32 %v413, 1.442695
        %v422 = vpow.pop %v421
        %v423 = vmul.f32 %v414, 1.442695
        %v424 = vpow.pop %v423
        %v425 = vmul.f32 %v415, 1.442695
        %v426 = vpow.pop %v425
        %v427 = vmul.f32 %v416, 1.442695
        %v428 = vpow.pop %v427
        %v429 = vmul.f32 %v417, 1.442695
        %v430 = vpow.pop %v429
        %v431 = vmul.f32 %v418, 1.442695
        %v432 = vpow.pop %v431
        %v433 = vmul.f32 %v419, 1.442695
        %v434 = vpow.pop %v433
        %v435 = vmul.f32 %v420, 1.442695
        %v436 = vpow.pop %v435
        %v437 = vrot.slane %v422, 4
        %v438 = vadd.f32 %v422, %v437
        %v439 = vrot.slane %v438, 2
        %v440 = vadd.f32 %v438, %v439
        %v441 = vrot.slane %v440, 1
        %v442 = vadd.f32 %v440, %v441
        %v443 = vrot.slane %v424, 4
        %v444 = vadd.f32 %v424, %v443
        %v445 = vrot.slane %v444, 2
        %v446 = vadd.f32 %v444, %v445
        %v447 = vrot.slane %v446, 1
        %v448 = vadd.f32 %v446, %v447
        %v449 = vrot.slane %v426, 4
        %v450 = vadd.f32 %v426, %v449
        %v451 = vrot.slane %v450, 2
        %v452 = vadd.f32 %v450, %v451
        %v453 = vrot.slane %v452, 1
        %v454 = vadd.f32 %v452, %v453
        %v455 = vrot.slane %v428, 4
        %v456 = vadd.f32 %v428, %v455
        %v457 = vrot.slane %v456, 2
        %v458 = vadd.f32 %v456, %v457
        %v459 = vrot.slane %v458, 1
        %v460 = vadd.f32 %v458, %v459
        %v461 = vrot.slane %v430, 4
        %v462 = vadd.f32 %v430, %v461
        %v463 = vrot.slane %v462, 2
        %v464 = vadd.f32 %v462, %v463
        %v465 = vrot.slane %v464, 1
        %v466 = vadd.f32 %v464, %v465
        %v467 = vrot.slane %v432, 4
        %v468 = vadd.f32 %v432, %v467
        %v469 = vrot.slane %v468, 2
        %v470 = vadd.f32 %v468, %v469
        %v471 = vrot.slane %v470, 1
        %v472 = vadd.f32 %v470, %v471
        %v473 = vrot.slane %v434, 4
        %v474 = vadd.f32 %v434, %v473
        %v475 = vrot.slane %v474, 2
        %v476 = vadd.f32 %v474, %v475
        %v477 = vrot.slane %v476, 1
        %v478 = vadd.f32 %v476, %v477
        %v479 = vrot.slane %v436, 4
        %v480 = vadd.f32 %v436, %v479
        %v481 = vrot.slane %v480, 2
        %v482 = vadd.f32 %v480, %v481
        %v483 = vrot.slane %v482, 1
        %v484 = vadd.f32 %v482, %v483
        %v485 = vrcp.pop %v442
        %v486 = vmul.f32 %v422, %v485
        %v487 = vrcp.pop %v448
        %v488 = vmul.f32 %v424, %v487
        %v489 = vrcp.pop %v454
        %v490 = vmul.f32 %v426, %v489
        %v491 = vrcp.pop %v460
        %v492 = vmul.f32 %v428, %v491
        %v493 = vrcp.pop %v466
        %v494 = vmul.f32 %v430, %v493
        %v495 = vrcp.pop %v472
        %v496 = vmul.f32 %v432, %v495
        %v497 = vrcp.pop %v478
        %v498 = vmul.f32 %v434, %v497
        %v499 = vrcp.pop %v484
        %v500 = vmul.f32 %v436, %v499
        %v502 = vlaneseq
        %v503 = vshrl.u32 %v502, 7
        %v504 = vsub.s32 0, %v503
        %v505 = vrot.slane %v268, %v504
        %v506 = vlaneseq
        %v507 = vshrl.u32 %v506, 7
        %v508 = vsub.s32 1, %v507
        %v509 = vrot.slane %v268, %v508
        %v510 = vlaneseq
        %v511 = vshrl.u32 %v510, 7
        %v512 = vsub.s32 2, %v511
        %v513 = vrot.slane %v268, %v512
        %v514 = vlaneseq
        %v515 = vshrl.u32 %v514, 7
        %v516 = vsub.s32 3, %v515
        %v517 = vrot.slane %v268, %v516
        %v518 = vlaneseq
        %v519 = vshrl.u32 %v518, 7
        %v520 = vsub.s32 4, %v519
        %v521 = vrot.slane %v268, %v520
        %v522 = vlaneseq
        %v523 = vshrl.u32 %v522, 7
        %v524 = vsub.s32 5, %v523
        %v525 = vrot.slane %v268, %v524
        %v526 = vlaneseq
        %v527 = vshrl.u32 %v526, 7
        %v528 = vsub.s32 6, %v527
        %v529 = vrot.slane %v268, %v528
        %v530 = vlaneseq
        %v531 = vshrl.u32 %v530, 7
        %v532 = vsub.s32 7, %v531
        %v533 = vrot.slane %v268, %v532
        %v542 = vmul.f32 %v357, %v505
        %v543 = vmul.f32 %v358, %v509
        %v544 = vmul.f32 %v359, %v513
        %v545 = vmul.f32 %v360, %v517
        %v546 = vmul.f32 %v361, %v521
        %v547 = vmul.f32 %v362, %v525
        %v548 = vmul.f32 %v363, %v529
        %v549 = vmul.f32 %v364, %v533
        %v550 = vadd.f32 %v542, %v277
        %v551 = vadd.f32 %v543, %v278
        %v552 = vadd.f32 %v544, %v279
        %v553 = vadd.f32 %v545, %v280
        %v554 = vadd.f32 %v546, %v281
        %v555 = vadd.f32 %v547, %v282
        %v556 = vadd.f32 %v548, %v283
        %v557 = vadd.f32 %v549, %v284
        %v558 = vand.u32 2147483647, %v550
        %v559 = vand.u32 2147483647, %v551
        %v560 = vand.u32 2147483647, %v552
        %v561 = vand.u32 2147483647, %v553
        %v562 = vand.u32 2147483647, %v554
        %v563 = vand.u32 2147483647, %v555
        %v564 = vand.u32 2147483647, %v556
        %v565 = vand.u32 2147483647, %v557
        %v566 = vsub.f32 0.0, %v558
        %v567 = vsub.f32 0.0, %v559
        %v568 = vsub.f32 0.0, %v560
        %v569 = vsub.f32 0.0, %v561
        %v570 = vsub.f32 0.0, %v562
        %v571 = vsub.f32 0.0, %v563
        %v572 = vsub.f32 0.0, %v564
        %v573 = vsub.f32 0.0, %v565
        %v574 = vrot.slane %v566, 4
        %v575 = vmax.f32 %v566, %v574
        %v576 = vrot.slane %v575, 2
        %v577 = vmax.f32 %v575, %v576
        %v578 = vrot.slane %v577, 1
        %v579 = vmax.f32 %v577, %v578
        %v580 = vrot.slane %v567, 4
        %v581 = vmax.f32 %v567, %v580
        %v582 = vrot.slane %v581, 2
        %v583 = vmax.f32 %v581, %v582
        %v584 = vrot.slane %v583, 1
        %v585 = vmax.f32 %v583, %v584
        %v586 = vrot.slane %v568, 4
        %v587 = vmax.f32 %v568, %v586
        %v588 = vrot.slane %v587, 2
        %v589 = vmax.f32 %v587, %v588
        %v590 = vrot.slane %v589, 1
        %v591 = vmax.f32 %v589, %v590
        %v592 = vrot.slane %v569, 4
        %v593 = vmax.f32 %v569, %v592
        %v594 = vrot.slane %v593, 2
        %v595 = vmax.f32 %v593, %v594
        %v596 = vrot.slane %v595, 1
        %v597 = vmax.f32 %v595, %v596
        %v598 = vrot.slane %v570, 4
        %v599 = vmax.f32 %v570, %v598
        %v600 = vrot.slane %v599, 2
        %v601 = vmax.f32 %v599, %v600
        %v602 = vrot.slane %v601, 1
        %v603 = vmax.f32 %v601, %v602
        %v604 = vrot.slane %v571, 4
        %v605 = vmax.f32 %v571, %v604
        %v606 = vrot.slane %v605, 2
        %v607 = vmax.f32 %v605, %v606
        %v608 = vrot.slane %v607, 1
        %v609 = vmax.f32 %v607, %v608
        %v610 = vrot.slane %v572, 4
        %v611 = vmax.f32 %v572, %v610
        %v612 = vrot.slane %v611, 2
        %v613 = vmax.f32 %v611, %v612
        %v614 = vrot.slane %v613, 1
        %v615 = vmax.f32 %v613, %v614
        %v616 = vrot.slane %v573, 4
        %v617 = vmax.f32 %v573, %v616
        %v618 = vrot.slane %v617, 2
        %v619 = vmax.f32 %v617, %v618
        %v620 = vrot.slane %v619, 1
        %v621 = vmax.f32 %v619, %v620
        %v622 = vsub.f32 %v566, %v579
        %v623 = vsub.f32 %v567, %v585
        %v624 = vsub.f32 %v568, %v591
        %v625 = vsub.f32 %v569, %v597
        %v626 = vsub.f32 %v570, %v603
        %v627 = vsub.f32 %v571, %v609
        %v628 = vsub.f32 %v572, %v615
        %v629 = vsub.f32 %v573, %v621
        %v630 = vmul.f32 %v622, 1.442695
        %v631 = vpow.pop %v630
        %v632 = vmul.f32 %v623, 1.442695
        %v633 = vpow.pop %v632
        %v634 = vmul.f32 %v624, 1.442695
        %v635 = vpow.pop %v634
        %v636 = vmul.f32 %v625, 1.442695
        %v637 = vpow.pop %v636
        %v638 = vmul.f32 %v626, 1.442695
        %v639 = vpow.pop %v638
        %v640 = vmul.f32 %v627, 1.442695
        %v641 = vpow.pop %v640
        %v642 = vmul.f32 %v628, 1.442695
        %v643 = vpow.pop %v642
        %v644 = vmul.f32 %v629, 1.442695
        %v645 = vpow.pop %v644
        %v646 = vmul.f32 %v579, 1.442695
        %v647 = vpow.pop %v646
        %v648 = vmul.f32 %v585, 1.442695
        %v649 = vpow.pop %v648
        %v650 = vmul.f32 %v591, 1.442695
        %v651 = vpow.pop %v650
        %v652 = vmul.f32 %v597, 1.442695
        %v653 = vpow.pop %v652
        %v654 = vmul.f32 %v603, 1.442695
        %v655 = vpow.pop %v654
        %v656 = vmul.f32 %v609, 1.442695
        %v657 = vpow.pop %v656
        %v658 = vmul.f32 %v615, 1.442695
        %v659 = vpow.pop %v658
        %v660 = vmul.f32 %v621, 1.442695
        %v661 = vpow.pop %v660
        %v662 = vmul.f32 %v631, %v647
        %v663 = vmul.f32 %v633, %v649
        %v664 = vmul.f32 %v635, %v651
        %v665 = vmul.f32 %v637, %v653
        %v666 = vmul.f32 %v639, %v655
        %v667 = vmul.f32 %v641, %v657
        %v668 = vmul.f32 %v643, %v659
        %v669 = vmul.f32 %v645, %v661
        %v670 = vadd.f32 %v662, 1.0
        %v671 = vadd.f32 %v663, 1.0
        %v672 = vadd.f32 %v664, 1.0
        %v673 = vadd.f32 %v665, 1.0
        %v674 = vadd.f32 %v666, 1.0
        %v675 = vadd.f32 %v667, 1.0
        %v676 = vadd.f32 %v668, 1.0
        %v677 = vadd.f32 %v669, 1.0
        %v678 = vrcp.pop %v670
        %v679 = vmul.f32 1.0, %v678
        %v680 = vrcp.pop %v671
        %v681 = vmul.f32 1.0, %v680
        %v682 = vrcp.pop %v672
        %v683 = vmul.f32 1.0, %v682
        %v684 = vrcp.pop %v673
        %v685 = vmul.f32 1.0, %v684
        %v686 = vrcp.pop %v674
        %v687 = vmul.f32 1.0, %v686
        %v688 = vrcp.pop %v675
        %v689 = vmul.f32 1.0, %v688
        %v690 = vrcp.pop %v676
        %v691 = vmul.f32 1.0, %v690
        %v692 = vrcp.pop %v677
        %v693 = vmul.f32 1.0, %v692
        %vm694 = vcmp.ge.f32.partialorder %v550, 0.0
        %vm695 = vcmp.ge.f32.partialorder %v551, 0.0
        %vm696 = vcmp.ge.f32.partialorder %v552, 0.0
        %vm697 = vcmp.ge.f32.partialorder %v553, 0.0
        %vm698 = vcmp.ge.f32.partialorder %v554, 0.0
        %vm699 = vcmp.ge.f32.partialorder %v555, 0.0
        %vm700 = vcmp.ge.f32.partialorder %v556, 0.0
        %vm701 = vcmp.ge.f32.partialorder %v557, 0.0
        %v702 = vsub.f32 1.0, %v679
        %v703 = vsub.f32 1.0, %v681
        %v704 = vsub.f32 1.0, %v683
        %v705 = vsub.f32 1.0, %v685
        %v706 = vsub.f32 1.0, %v687
        %v707 = vsub.f32 1.0, %v689
        %v708 = vsub.f32 1.0, %v691
        %v709 = vsub.f32 1.0, %v693
        %v710 = vsel %vm694, %v679, %v702
        %v711 = vsel %vm695, %v681, %v703
        %v712 = vsel %vm696, %v683, %v704
        %v713 = vsel %vm697, %v685, %v705
        %v714 = vsel %vm698, %v687, %v706
        %v715 = vsel %vm699, %v689, %v707
        %v716 = vsel %vm700, %v691, %v708
        %v717 = vsel %vm701, %v693, %v709
        %v718 = vmul.f32 %v486, %v710
        %v719 = vmul.f32 %v488, %v711
        %v720 = vmul.f32 %v490, %v712
        %v721 = vmul.f32 %v492, %v713
        %v722 = vmul.f32 %v494, %v714
        %v723 = vmul.f32 %v496, %v715
        %v724 = vmul.f32 %v498, %v716
        %v725 = vmul.f32 %v500, %v717
        %v726 = vrot.slane %v718, 4
        %v727 = vadd.f32 %v718, %v726
        %v728 = vrot.slane %v727, 2
        %v729 = vadd.f32 %v727, %v728
        %v730 = vrot.slane %v729, 1
        %v731 = vadd.f32 %v729, %v730
        %v732 = vrot.slane %v719, 4
        %v733 = vadd.f32 %v719, %v732
        %v734 = vrot.slane %v733, 2
        %v735 = vadd.f32 %v733, %v734
        %v736 = vrot.slane %v735, 1
        %v737 = vadd.f32 %v735, %v736
        %v738 = vrot.slane %v720, 4
        %v739 = vadd.f32 %v720, %v738
        %v740 = vrot.slane %v739, 2
        %v741 = vadd.f32 %v739, %v740
        %v742 = vrot.slane %v741, 1
        %v743 = vadd.f32 %v741, %v742
        %v744 = vrot.slane %v721, 4
        %v745 = vadd.f32 %v721, %v744
        %v746 = vrot.slane %v745, 2
        %v747 = vadd.f32 %v745, %v746
        %v748 = vrot.slane %v747, 1
        %v749 = vadd.f32 %v747, %v748
        %v750 = vrot.slane %v722, 4
        %v751 = vadd.f32 %v722, %v750
        %v752 = vrot.slane %v751, 2
        %v753 = vadd.f32 %v751, %v752
        %v754 = vrot.slane %v753, 1
        %v755 = vadd.f32 %v753, %v754
        %v756 = vrot.slane %v723, 4
        %v757 = vadd.f32 %v723, %v756
        %v758 = vrot.slane %v757, 2
        %v759 = vadd.f32 %v757, %v758
        %v760 = vrot.slane %v759, 1
        %v761 = vadd.f32 %v759, %v760
        %v762 = vrot.slane %v724, 4
        %v763 = vadd.f32 %v724, %v762
        %v764 = vrot.slane %v763, 2
        %v765 = vadd.f32 %v763, %v764
        %v766 = vrot.slane %v765, 1
        %v767 = vadd.f32 %v765, %v766
        %v768 = vrot.slane %v725, 4
        %v769 = vadd.f32 %v725, %v768
        %v770 = vrot.slane %v769, 2
        %v771 = vadd.f32 %v769, %v770
        %v772 = vrot.slane %v771, 1
        %v773 = vadd.f32 %v771, %v772
        %v774 = vmul.f32 %v486, %v357
        %v775 = vmul.f32 %v488, %v358
        %v776 = vmul.f32 %v490, %v359
        %v777 = vmul.f32 %v492, %v360
        %v778 = vmul.f32 %v494, %v361
        %v779 = vmul.f32 %v496, %v362
        %v780 = vmul.f32 %v498, %v363
        %v781 = vmul.f32 %v500, %v364
        %v782 = vmul.f32 %v774, %v631
        %v783 = vmul.f32 %v775, %v633
        %v784 = vmul.f32 %v776, %v635
        %v785 = vmul.f32 %v777, %v637
        %v786 = vmul.f32 %v778, %v639
        %v787 = vmul.f32 %v779, %v641
        %v788 = vmul.f32 %v780, %v643
        %v789 = vmul.f32 %v781, %v645
        %v790 = vmul.f32 %v679, %v679
        %v791 = vmul.f32 %v681, %v681
        %v792 = vmul.f32 %v683, %v683
        %v793 = vmul.f32 %v685, %v685
        %v794 = vmul.f32 %v687, %v687
        %v795 = vmul.f32 %v689, %v689
        %v796 = vmul.f32 %v691, %v691
        %v797 = vmul.f32 %v693, %v693
        %v798 = vmul.f32 %v782, %v790
        %v799 = vmul.f32 %v783, %v791
        %v800 = vmul.f32 %v784, %v792
        %v801 = vmul.f32 %v785, %v793
        %v802 = vmul.f32 %v786, %v794
        %v803 = vmul.f32 %v787, %v795
        %v804 = vmul.f32 %v788, %v796
        %v805 = vmul.f32 %v789, %v797
        %v806 = vrot.slane %v798, 4
        %v807 = vadd.f32 %v798, %v806
        %v808 = vrot.slane %v807, 2
        %v809 = vadd.f32 %v807, %v808
        %v810 = vrot.slane %v809, 1
        %v811 = vadd.f32 %v809, %v810
        %v812 = vrot.slane %v799, 4
        %v813 = vadd.f32 %v799, %v812
        %v814 = vrot.slane %v813, 2
        %v815 = vadd.f32 %v813, %v814
        %v816 = vrot.slane %v815, 1
        %v817 = vadd.f32 %v815, %v816
        %v818 = vrot.slane %v800, 4
        %v819 = vadd.f32 %v800, %v818
        %v820 = vrot.slane %v819, 2
        %v821 = vadd.f32 %v819, %v820
        %v822 = vrot.slane %v821, 1
        %v823 = vadd.f32 %v821, %v822
        %v824 = vrot.slane %v801, 4
        %v825 = vadd.f32 %v801, %v824
        %v826 = vrot.slane %v825, 2
        %v827 = vadd.f32 %v825, %v826
        %v828 = vrot.slane %v827, 1
        %v829 = vadd.f32 %v827, %v828
        %v830 = vrot.slane %v802, 4
        %v831 = vadd.f32 %v802, %v830
        %v832 = vrot.slane %v831, 2
        %v833 = vadd.f32 %v831, %v832
        %v834 = vrot.slane %v833, 1
        %v835 = vadd.f32 %v833, %v834
        %v836 = vrot.slane %v803, 4
        %v837 = vadd.f32 %v803, %v836
        %v838 = vrot.slane %v837, 2
        %v839 = vadd.f32 %v837, %v838
        %v840 = vrot.slane %v839, 1
        %v841 = vadd.f32 %v839, %v840
        %v842 = vrot.slane %v804, 4
        %v843 = vadd.f32 %v804, %v842
        %v844 = vrot.slane %v843, 2
        %v845 = vadd.f32 %v843, %v844
        %v846 = vrot.slane %v845, 1
        %v847 = vadd.f32 %v845, %v846
        %v848 = vrot.slane %v805, 4
        %v849 = vadd.f32 %v805, %v848
        %v850 = vrot.slane %v849, 2
        %v851 = vadd.f32 %v849, %v850
        %v852 = vrot.slane %v851, 1
        %v853 = vadd.f32 %v851, %v852
        %v854 = vlog2.pop %v811
        %v855 = vmul.f32 %v854, 0.6931472
        %v856 = vlog2.pop %v817
        %v857 = vmul.f32 %v856, 0.6931472
        %v858 = vlog2.pop %v823
        %v859 = vmul.f32 %v858, 0.6931472
        %v860 = vlog2.pop %v829
        %v861 = vmul.f32 %v860, 0.6931472
        %v862 = vlog2.pop %v835
        %v863 = vmul.f32 %v862, 0.6931472
        %v864 = vlog2.pop %v841
        %v865 = vmul.f32 %v864, 0.6931472
        %v866 = vlog2.pop %v847
        %v867 = vmul.f32 %v866, 0.6931472
        %v868 = vlog2.pop %v853
        %v869 = vmul.f32 %v868, 0.6931472
        %v870 = vadd.f32 %v579, %v855
        %v871 = vadd.f32 %v585, %v857
        %v872 = vadd.f32 %v591, %v859
        %v873 = vadd.f32 %v597, %v861
        %v874 = vadd.f32 %v603, %v863
        %v875 = vadd.f32 %v609, %v865
        %v876 = vadd.f32 %v615, %v867
        %v877 = vadd.f32 %v621, %v869
        %v878 = vadd.f32 %v870, 0.0
        %v879 = vadd.f32 %v871, 0.0
        %v880 = vadd.f32 %v872, 0.0
        %v881 = vadd.f32 %v873, 0.0
        %v882 = vadd.f32 %v874, 0.0
        %v883 = vadd.f32 %v875, 0.0
        %v884 = vadd.f32 %v876, 0.0
        %v885 = vadd.f32 %v877, 0.0
        %v886 = vmul.f32 %v731, 0.999999
        %v887 = vmul.f32 %v737, 0.999999
        %v888 = vmul.f32 %v743, 0.999999
        %v889 = vmul.f32 %v749, 0.999999
        %v890 = vmul.f32 %v755, 0.999999
        %v891 = vmul.f32 %v761, 0.999999
        %v892 = vmul.f32 %v767, 0.999999
        %v893 = vmul.f32 %v773, 0.999999
        %v894 = vadd.f32 %v886, 5e-07
        %v895 = vadd.f32 %v887, 5e-07
        %v896 = vadd.f32 %v888, 5e-07
        %v897 = vadd.f32 %v889, 5e-07
        %v898 = vadd.f32 %v890, 5e-07
        %v899 = vadd.f32 %v891, 5e-07
        %v900 = vadd.f32 %v892, 5e-07
        %v901 = vadd.f32 %v893, 5e-07
        %v902 = vlog2.pop %v894
        %v903 = vmul.f32 %v902, 0.6931472
        %v904 = vlog2.pop %v895
        %v905 = vmul.f32 %v904, 0.6931472
        %v906 = vlog2.pop %v896
        %v907 = vmul.f32 %v906, 0.6931472
        %v908 = vlog2.pop %v897
        %v909 = vmul.f32 %v908, 0.6931472
        %v910 = vlog2.pop %v898
        %v911 = vmul.f32 %v910, 0.6931472
        %v912 = vlog2.pop %v899
        %v913 = vmul.f32 %v912, 0.6931472
        %v914 = vlog2.pop %v900
        %v915 = vmul.f32 %v914, 0.6931472
        %v916 = vlog2.pop %v901
        %v917 = vmul.f32 %v916, 0.6931472
        %v918 = vsub.f32 1.0, %v894
        %v919 = vsub.f32 1.0, %v895
        %v920 = vsub.f32 1.0, %v896
        %v921 = vsub.f32 1.0, %v897
        %v922 = vsub.f32 1.0, %v898
        %v923 = vsub.f32 1.0, %v899
        %v924 = vsub.f32 1.0, %v900
        %v925 = vsub.f32 1.0, %v901
        %v926 = vlog2.pop %v918
        %v927 = vmul.f32 %v926, 0.6931472
        %v928 = vlog2.pop %v919
        %v929 = vmul.f32 %v928, 0.6931472
        %v930 = vlog2.pop %v920
        %v931 = vmul.f32 %v930, 0.6931472
        %v932 = vlog2.pop %v921
        %v933 = vmul.f32 %v932, 0.6931472
        %v934 = vlog2.pop %v922
        %v935 = vmul.f32 %v934, 0.6931472
        %v936 = vlog2.pop %v923
        %v937 = vmul.f32 %v936, 0.6931472
        %v938 = vlog2.pop %v924
        %v939 = vmul.f32 %v938, 0.6931472
        %v940 = vlog2.pop %v925
        %v941 = vmul.f32 %v940, 0.6931472
        %v942 = vsub.f32 %v903, %v927
        %v943 = vsub.f32 %v905, %v929
        %v944 = vsub.f32 %v907, %v931
        %v945 = vsub.f32 %v909, %v933
        %v946 = vsub.f32 %v911, %v935
        %v947 = vsub.f32 %v913, %v937
        %v948 = vsub.f32 %v915, %v939
        %v949 = vsub.f32 %v917, %v941
        %v950 = vadd.f32 %v903, %v927
        %v951 = vadd.f32 %v905, %v929
        %v952 = vadd.f32 %v907, %v931
        %v953 = vadd.f32 %v909, %v933
        %v954 = vadd.f32 %v911, %v935
        %v955 = vadd.f32 %v913, %v937
        %v956 = vadd.f32 %v915, %v939
        %v957 = vadd.f32 %v917, %v941
        %v958 = vsub.f32 -1.0000005e-06, %v950
        %v959 = vsub.f32 -1.0000005e-06, %v951
        %v960 = vsub.f32 -1.0000005e-06, %v952
        %v961 = vsub.f32 -1.0000005e-06, %v953
        %v962 = vsub.f32 -1.0000005e-06, %v954
        %v963 = vsub.f32 -1.0000005e-06, %v955
        %v964 = vsub.f32 -1.0000005e-06, %v956
        %v965 = vsub.f32 -1.0000005e-06, %v957
        %v966 = vadd.f32 %v878, %v958
        %v967 = vadd.f32 %v879, %v959
        %v968 = vadd.f32 %v880, %v960
        %v969 = vadd.f32 %v881, %v961
        %v970 = vadd.f32 %v882, %v962
        %v971 = vadd.f32 %v883, %v963
        %v972 = vadd.f32 %v884, %v964
        %v973 = vadd.f32 %v885, %v965
        %v974 = vld [vmem:[%s220 + $0xc0] sm:$0xff]
        %v975 = vld [vmem:[%s220 + $0xc8] sm:$0xff]
        %v976 = vld [vmem:[%s220 + $0xd0] sm:$0xff]
        %v977 = vld [vmem:[%s220 + $0xd8] sm:$0xff]
        %v978 = vld [vmem:[%s220 + $0xe0] sm:$0xff]
        %v979 = vld [vmem:[%s220 + $0xe8] sm:$0xff]
        %v980 = vld [vmem:[%s220 + $0xf0] sm:$0xff]
        %v981 = vld [vmem:[%s220 + $0xf8] sm:$0xff]
        %v982 = vld [vmem:[%s220 + $0x100] sm:$0xff]
        %v983 = vld [vmem:[%s220 + $0x108] sm:$0xff]
        %v984 = vld [vmem:[%s220 + $0x110] sm:$0xff]
        %v985 = vld [vmem:[%s220 + $0x118] sm:$0xff]
        %v986 = vld [vmem:[%s220 + $0x120] sm:$0xff]
        %v987 = vld [vmem:[%s220 + $0x128] sm:$0xff]
        %v988 = vld [vmem:[%s220 + $0x130] sm:$0xff]
        %v989 = vld [vmem:[%s220 + $0x138] sm:$0xff]
        %v990 = vld [vmem:[%s220 + $0x140] sm:$0xff]
        %v991 = vld [vmem:[%s220 + $0x148] sm:$0xff]
        %v992 = vld [vmem:[%s220 + $0x150] sm:$0xff]
        %v993 = vld [vmem:[%s220 + $0x158] sm:$0xff]
        %v994 = vld [vmem:[%s220 + $0x160] sm:$0xff]
        %v995 = vld [vmem:[%s220 + $0x168] sm:$0xff]
        %v996 = vld [vmem:[%s220 + $0x170] sm:$0xff]
        %v997 = vld [vmem:[%s220 + $0x178] sm:$0xff]
        %v998 = vmax.f32 %v974, 0.0
        %v999 = vmax.f32 %v975, 0.0
        %v1000 = vmax.f32 %v976, 0.0
        %v1001 = vmax.f32 %v977, 0.0
        %v1002 = vmax.f32 %v978, 0.0
        %v1003 = vmax.f32 %v979, 0.0
        %v1004 = vmax.f32 %v980, 0.0
        %v1005 = vmax.f32 %v981, 0.0
        %v1006 = vand.u32 2147483647, %v974
        %v1007 = vand.u32 2147483647, %v975
        %v1008 = vand.u32 2147483647, %v976
        %v1009 = vand.u32 2147483647, %v977
        %v1010 = vand.u32 2147483647, %v978
        %v1011 = vand.u32 2147483647, %v979
        %v1012 = vand.u32 2147483647, %v980
        %v1013 = vand.u32 2147483647, %v981
        %v1014 = vsub.f32 0.0, %v1006
        %v1015 = vsub.f32 0.0, %v1007
        %v1016 = vsub.f32 0.0, %v1008
        %v1017 = vsub.f32 0.0, %v1009
        %v1018 = vsub.f32 0.0, %v1010
        %v1019 = vsub.f32 0.0, %v1011
        %v1020 = vsub.f32 0.0, %v1012
        %v1021 = vsub.f32 0.0, %v1013
        %v1022 = vmul.f32 %v1014, 1.442695
        %v1023 = vpow.pop %v1022
        %v1024 = vmul.f32 %v1015, 1.442695
        %v1025 = vpow.pop %v1024
        %v1026 = vmul.f32 %v1016, 1.442695
        %v1027 = vpow.pop %v1026
        %v1028 = vmul.f32 %v1017, 1.442695
        %v1029 = vpow.pop %v1028
        %v1030 = vmul.f32 %v1018, 1.442695
        %v1031 = vpow.pop %v1030
        %v1032 = vmul.f32 %v1019, 1.442695
        %v1033 = vpow.pop %v1032
        %v1034 = vmul.f32 %v1020, 1.442695
        %v1035 = vpow.pop %v1034
        %v1036 = vmul.f32 %v1021, 1.442695
        %v1037 = vpow.pop %v1036
        %v1038 = vadd.f32 %v1023, 1.0
        %v1039 = vadd.f32 %v1025, 1.0
        %v1040 = vadd.f32 %v1027, 1.0
        %v1041 = vadd.f32 %v1029, 1.0
        %v1042 = vadd.f32 %v1031, 1.0
        %v1043 = vadd.f32 %v1033, 1.0
        %v1044 = vadd.f32 %v1035, 1.0
        %v1045 = vadd.f32 %v1037, 1.0
        %v1046 = vlog2.pop %v1038
        %v1047 = vmul.f32 %v1046, 0.6931472
        %v1048 = vlog2.pop %v1039
        %v1049 = vmul.f32 %v1048, 0.6931472
        %v1050 = vlog2.pop %v1040
        %v1051 = vmul.f32 %v1050, 0.6931472
        %v1052 = vlog2.pop %v1041
        %v1053 = vmul.f32 %v1052, 0.6931472
        %v1054 = vlog2.pop %v1042
        %v1055 = vmul.f32 %v1054, 0.6931472
        %v1056 = vlog2.pop %v1043
        %v1057 = vmul.f32 %v1056, 0.6931472
        %v1058 = vlog2.pop %v1044
        %v1059 = vmul.f32 %v1058, 0.6931472
        %v1060 = vlog2.pop %v1045
        %v1061 = vmul.f32 %v1060, 0.6931472
        %v1062 = vadd.f32 %v998, %v1047
        %v1063 = vadd.f32 %v999, %v1049
        %v1064 = vadd.f32 %v1000, %v1051
        %v1065 = vadd.f32 %v1001, %v1053
        %v1066 = vadd.f32 %v1002, %v1055
        %v1067 = vadd.f32 %v1003, %v1057
        %v1068 = vadd.f32 %v1004, %v1059
        %v1069 = vadd.f32 %v1005, %v1061
        %v1070 = vrot.slane %v990, 4
        %v1071 = vmax.f32 %v990, %v1070
        %v1072 = vrot.slane %v1071, 2
        %v1073 = vmax.f32 %v1071, %v1072
        %v1074 = vrot.slane %v1073, 1
        %v1075 = vmax.f32 %v1073, %v1074
        %v1076 = vrot.slane %v991, 4
        %v1077 = vmax.f32 %v991, %v1076
        %v1078 = vrot.slane %v1077, 2
        %v1079 = vmax.f32 %v1077, %v1078
        %v1080 = vrot.slane %v1079, 1
        %v1081 = vmax.f32 %v1079, %v1080
        %v1082 = vrot.slane %v992, 4
        %v1083 = vmax.f32 %v992, %v1082
        %v1084 = vrot.slane %v1083, 2
        %v1085 = vmax.f32 %v1083, %v1084
        %v1086 = vrot.slane %v1085, 1
        %v1087 = vmax.f32 %v1085, %v1086
        %v1088 = vrot.slane %v993, 4
        %v1089 = vmax.f32 %v993, %v1088
        %v1090 = vrot.slane %v1089, 2
        %v1091 = vmax.f32 %v1089, %v1090
        %v1092 = vrot.slane %v1091, 1
        %v1093 = vmax.f32 %v1091, %v1092
        %v1094 = vrot.slane %v994, 4
        %v1095 = vmax.f32 %v994, %v1094
        %v1096 = vrot.slane %v1095, 2
        %v1097 = vmax.f32 %v1095, %v1096
        %v1098 = vrot.slane %v1097, 1
        %v1099 = vmax.f32 %v1097, %v1098
        %v1100 = vrot.slane %v995, 4
        %v1101 = vmax.f32 %v995, %v1100
        %v1102 = vrot.slane %v1101, 2
        %v1103 = vmax.f32 %v1101, %v1102
        %v1104 = vrot.slane %v1103, 1
        %v1105 = vmax.f32 %v1103, %v1104
        %v1106 = vrot.slane %v996, 4
        %v1107 = vmax.f32 %v996, %v1106
        %v1108 = vrot.slane %v1107, 2
        %v1109 = vmax.f32 %v1107, %v1108
        %v1110 = vrot.slane %v1109, 1
        %v1111 = vmax.f32 %v1109, %v1110
        %v1112 = vrot.slane %v997, 4
        %v1113 = vmax.f32 %v997, %v1112
        %v1114 = vrot.slane %v1113, 2
        %v1115 = vmax.f32 %v1113, %v1114
        %v1116 = vrot.slane %v1115, 1
        %v1117 = vmax.f32 %v1115, %v1116
        %v1118 = vsub.f32 %v990, %v1075
        %v1119 = vsub.f32 %v991, %v1081
        %v1120 = vsub.f32 %v992, %v1087
        %v1121 = vsub.f32 %v993, %v1093
        %v1122 = vsub.f32 %v994, %v1099
        %v1123 = vsub.f32 %v995, %v1105
        %v1124 = vsub.f32 %v996, %v1111
        %v1125 = vsub.f32 %v997, %v1117
        %v1126 = vmul.f32 %v1118, 1.442695
        %v1127 = vpow.pop %v1126
        %v1128 = vmul.f32 %v1119, 1.442695
        %v1129 = vpow.pop %v1128
        %v1130 = vmul.f32 %v1120, 1.442695
        %v1131 = vpow.pop %v1130
        %v1132 = vmul.f32 %v1121, 1.442695
        %v1133 = vpow.pop %v1132
        %v1134 = vmul.f32 %v1122, 1.442695
        %v1135 = vpow.pop %v1134
        %v1136 = vmul.f32 %v1123, 1.442695
        %v1137 = vpow.pop %v1136
        %v1138 = vmul.f32 %v1124, 1.442695
        %v1139 = vpow.pop %v1138
        %v1140 = vmul.f32 %v1125, 1.442695
        %v1141 = vpow.pop %v1140
        %v1142 = vrot.slane %v1127, 4
        %v1143 = vadd.f32 %v1127, %v1142
        %v1144 = vrot.slane %v1143, 2
        %v1145 = vadd.f32 %v1143, %v1144
        %v1146 = vrot.slane %v1145, 1
        %v1147 = vadd.f32 %v1145, %v1146
        %v1148 = vrot.slane %v1129, 4
        %v1149 = vadd.f32 %v1129, %v1148
        %v1150 = vrot.slane %v1149, 2
        %v1151 = vadd.f32 %v1149, %v1150
        %v1152 = vrot.slane %v1151, 1
        %v1153 = vadd.f32 %v1151, %v1152
        %v1154 = vrot.slane %v1131, 4
        %v1155 = vadd.f32 %v1131, %v1154
        %v1156 = vrot.slane %v1155, 2
        %v1157 = vadd.f32 %v1155, %v1156
        %v1158 = vrot.slane %v1157, 1
        %v1159 = vadd.f32 %v1157, %v1158
        %v1160 = vrot.slane %v1133, 4
        %v1161 = vadd.f32 %v1133, %v1160
        %v1162 = vrot.slane %v1161, 2
        %v1163 = vadd.f32 %v1161, %v1162
        %v1164 = vrot.slane %v1163, 1
        %v1165 = vadd.f32 %v1163, %v1164
        %v1166 = vrot.slane %v1135, 4
        %v1167 = vadd.f32 %v1135, %v1166
        %v1168 = vrot.slane %v1167, 2
        %v1169 = vadd.f32 %v1167, %v1168
        %v1170 = vrot.slane %v1169, 1
        %v1171 = vadd.f32 %v1169, %v1170
        %v1172 = vrot.slane %v1137, 4
        %v1173 = vadd.f32 %v1137, %v1172
        %v1174 = vrot.slane %v1173, 2
        %v1175 = vadd.f32 %v1173, %v1174
        %v1176 = vrot.slane %v1175, 1
        %v1177 = vadd.f32 %v1175, %v1176
        %v1178 = vrot.slane %v1139, 4
        %v1179 = vadd.f32 %v1139, %v1178
        %v1180 = vrot.slane %v1179, 2
        %v1181 = vadd.f32 %v1179, %v1180
        %v1182 = vrot.slane %v1181, 1
        %v1183 = vadd.f32 %v1181, %v1182
        %v1184 = vrot.slane %v1141, 4
        %v1185 = vadd.f32 %v1141, %v1184
        %v1186 = vrot.slane %v1185, 2
        %v1187 = vadd.f32 %v1185, %v1186
        %v1188 = vrot.slane %v1187, 1
        %v1189 = vadd.f32 %v1187, %v1188
        %v1190 = vrcp.pop %v1147
        %v1191 = vmul.f32 %v1127, %v1190
        %v1192 = vrcp.pop %v1153
        %v1193 = vmul.f32 %v1129, %v1192
        %v1194 = vrcp.pop %v1159
        %v1195 = vmul.f32 %v1131, %v1194
        %v1196 = vrcp.pop %v1165
        %v1197 = vmul.f32 %v1133, %v1196
        %v1198 = vrcp.pop %v1171
        %v1199 = vmul.f32 %v1135, %v1198
        %v1200 = vrcp.pop %v1177
        %v1201 = vmul.f32 %v1137, %v1200
        %v1202 = vrcp.pop %v1183
        %v1203 = vmul.f32 %v1139, %v1202
        %v1204 = vrcp.pop %v1189
        %v1205 = vmul.f32 %v1141, %v1204
        %v1206 = vmul.f32 %v1062, %v942
        %v1207 = vmul.f32 %v1063, %v943
        %v1208 = vmul.f32 %v1064, %v944
        %v1209 = vmul.f32 %v1065, %v945
        %v1210 = vmul.f32 %v1066, %v946
        %v1211 = vmul.f32 %v1067, %v947
        %v1212 = vmul.f32 %v1068, %v948
        %v1213 = vmul.f32 %v1069, %v949
        %v1214 = vadd.f32 %v1206, %v982
        %v1215 = vadd.f32 %v1207, %v983
        %v1216 = vadd.f32 %v1208, %v984
        %v1217 = vadd.f32 %v1209, %v985
        %v1218 = vadd.f32 %v1210, %v986
        %v1219 = vadd.f32 %v1211, %v987
        %v1220 = vadd.f32 %v1212, %v988
        %v1221 = vadd.f32 %v1213, %v989
        %v1222 = vand.u32 2147483647, %v1214
        %v1223 = vand.u32 2147483647, %v1215
        %v1224 = vand.u32 2147483647, %v1216
        %v1225 = vand.u32 2147483647, %v1217
        %v1226 = vand.u32 2147483647, %v1218
        %v1227 = vand.u32 2147483647, %v1219
        %v1228 = vand.u32 2147483647, %v1220
        %v1229 = vand.u32 2147483647, %v1221
        %v1230 = vsub.f32 0.0, %v1222
        %v1231 = vsub.f32 0.0, %v1223
        %v1232 = vsub.f32 0.0, %v1224
        %v1233 = vsub.f32 0.0, %v1225
        %v1234 = vsub.f32 0.0, %v1226
        %v1235 = vsub.f32 0.0, %v1227
        %v1236 = vsub.f32 0.0, %v1228
        %v1237 = vsub.f32 0.0, %v1229
        %v1238 = vrot.slane %v1230, 4
        %v1239 = vmax.f32 %v1230, %v1238
        %v1240 = vrot.slane %v1239, 2
        %v1241 = vmax.f32 %v1239, %v1240
        %v1242 = vrot.slane %v1241, 1
        %v1243 = vmax.f32 %v1241, %v1242
        %v1244 = vrot.slane %v1231, 4
        %v1245 = vmax.f32 %v1231, %v1244
        %v1246 = vrot.slane %v1245, 2
        %v1247 = vmax.f32 %v1245, %v1246
        %v1248 = vrot.slane %v1247, 1
        %v1249 = vmax.f32 %v1247, %v1248
        %v1250 = vrot.slane %v1232, 4
        %v1251 = vmax.f32 %v1232, %v1250
        %v1252 = vrot.slane %v1251, 2
        %v1253 = vmax.f32 %v1251, %v1252
        %v1254 = vrot.slane %v1253, 1
        %v1255 = vmax.f32 %v1253, %v1254
        %v1256 = vrot.slane %v1233, 4
        %v1257 = vmax.f32 %v1233, %v1256
        %v1258 = vrot.slane %v1257, 2
        %v1259 = vmax.f32 %v1257, %v1258
        %v1260 = vrot.slane %v1259, 1
        %v1261 = vmax.f32 %v1259, %v1260
        %v1262 = vrot.slane %v1234, 4
        %v1263 = vmax.f32 %v1234, %v1262
        %v1264 = vrot.slane %v1263, 2
        %v1265 = vmax.f32 %v1263, %v1264
        %v1266 = vrot.slane %v1265, 1
        %v1267 = vmax.f32 %v1265, %v1266
        %v1268 = vrot.slane %v1235, 4
        %v1269 = vmax.f32 %v1235, %v1268
        %v1270 = vrot.slane %v1269, 2
        %v1271 = vmax.f32 %v1269, %v1270
        %v1272 = vrot.slane %v1271, 1
        %v1273 = vmax.f32 %v1271, %v1272
        %v1274 = vrot.slane %v1236, 4
        %v1275 = vmax.f32 %v1236, %v1274
        %v1276 = vrot.slane %v1275, 2
        %v1277 = vmax.f32 %v1275, %v1276
        %v1278 = vrot.slane %v1277, 1
        %v1279 = vmax.f32 %v1277, %v1278
        %v1280 = vrot.slane %v1237, 4
        %v1281 = vmax.f32 %v1237, %v1280
        %v1282 = vrot.slane %v1281, 2
        %v1283 = vmax.f32 %v1281, %v1282
        %v1284 = vrot.slane %v1283, 1
        %v1285 = vmax.f32 %v1283, %v1284
        %v1286 = vsub.f32 %v1230, %v1243
        %v1287 = vsub.f32 %v1231, %v1249
        %v1288 = vsub.f32 %v1232, %v1255
        %v1289 = vsub.f32 %v1233, %v1261
        %v1290 = vsub.f32 %v1234, %v1267
        %v1291 = vsub.f32 %v1235, %v1273
        %v1292 = vsub.f32 %v1236, %v1279
        %v1293 = vsub.f32 %v1237, %v1285
        %v1294 = vmul.f32 %v1286, 1.442695
        %v1295 = vpow.pop %v1294
        %v1296 = vmul.f32 %v1287, 1.442695
        %v1297 = vpow.pop %v1296
        %v1298 = vmul.f32 %v1288, 1.442695
        %v1299 = vpow.pop %v1298
        %v1300 = vmul.f32 %v1289, 1.442695
        %v1301 = vpow.pop %v1300
        %v1302 = vmul.f32 %v1290, 1.442695
        %v1303 = vpow.pop %v1302
        %v1304 = vmul.f32 %v1291, 1.442695
        %v1305 = vpow.pop %v1304
        %v1306 = vmul.f32 %v1292, 1.442695
        %v1307 = vpow.pop %v1306
        %v1308 = vmul.f32 %v1293, 1.442695
        %v1309 = vpow.pop %v1308
        %v1310 = vmul.f32 %v1243, 1.442695
        %v1311 = vpow.pop %v1310
        %v1312 = vmul.f32 %v1249, 1.442695
        %v1313 = vpow.pop %v1312
        %v1314 = vmul.f32 %v1255, 1.442695
        %v1315 = vpow.pop %v1314
        %v1316 = vmul.f32 %v1261, 1.442695
        %v1317 = vpow.pop %v1316
        %v1318 = vmul.f32 %v1267, 1.442695
        %v1319 = vpow.pop %v1318
        %v1320 = vmul.f32 %v1273, 1.442695
        %v1321 = vpow.pop %v1320
        %v1322 = vmul.f32 %v1279, 1.442695
        %v1323 = vpow.pop %v1322
        %v1324 = vmul.f32 %v1285, 1.442695
        %v1325 = vpow.pop %v1324
        %v1326 = vmul.f32 %v1295, %v1311
        %v1327 = vmul.f32 %v1297, %v1313
        %v1328 = vmul.f32 %v1299, %v1315
        %v1329 = vmul.f32 %v1301, %v1317
        %v1330 = vmul.f32 %v1303, %v1319
        %v1331 = vmul.f32 %v1305, %v1321
        %v1332 = vmul.f32 %v1307, %v1323
        %v1333 = vmul.f32 %v1309, %v1325
        %v1334 = vadd.f32 %v1326, 1.0
        %v1335 = vadd.f32 %v1327, 1.0
        %v1336 = vadd.f32 %v1328, 1.0
        %v1337 = vadd.f32 %v1329, 1.0
        %v1338 = vadd.f32 %v1330, 1.0
        %v1339 = vadd.f32 %v1331, 1.0
        %v1340 = vadd.f32 %v1332, 1.0
        %v1341 = vadd.f32 %v1333, 1.0
        %v1342 = vrcp.pop %v1334
        %v1343 = vmul.f32 1.0, %v1342
        %v1344 = vrcp.pop %v1335
        %v1345 = vmul.f32 1.0, %v1344
        %v1346 = vrcp.pop %v1336
        %v1347 = vmul.f32 1.0, %v1346
        %v1348 = vrcp.pop %v1337
        %v1349 = vmul.f32 1.0, %v1348
        %v1350 = vrcp.pop %v1338
        %v1351 = vmul.f32 1.0, %v1350
        %v1352 = vrcp.pop %v1339
        %v1353 = vmul.f32 1.0, %v1352
        %v1354 = vrcp.pop %v1340
        %v1355 = vmul.f32 1.0, %v1354
        %v1356 = vrcp.pop %v1341
        %v1357 = vmul.f32 1.0, %v1356
        %vm1358 = vcmp.ge.f32.partialorder %v1214, 0.0
        %vm1359 = vcmp.ge.f32.partialorder %v1215, 0.0
        %vm1360 = vcmp.ge.f32.partialorder %v1216, 0.0
        %vm1361 = vcmp.ge.f32.partialorder %v1217, 0.0
        %vm1362 = vcmp.ge.f32.partialorder %v1218, 0.0
        %vm1363 = vcmp.ge.f32.partialorder %v1219, 0.0
        %vm1364 = vcmp.ge.f32.partialorder %v1220, 0.0
        %vm1365 = vcmp.ge.f32.partialorder %v1221, 0.0
        %v1366 = vsub.f32 1.0, %v1343
        %v1367 = vsub.f32 1.0, %v1345
        %v1368 = vsub.f32 1.0, %v1347
        %v1369 = vsub.f32 1.0, %v1349
        %v1370 = vsub.f32 1.0, %v1351
        %v1371 = vsub.f32 1.0, %v1353
        %v1372 = vsub.f32 1.0, %v1355
        %v1373 = vsub.f32 1.0, %v1357
        %v1374 = vsel %vm1358, %v1343, %v1366
        %v1375 = vsel %vm1359, %v1345, %v1367
        %v1376 = vsel %vm1360, %v1347, %v1368
        %v1377 = vsel %vm1361, %v1349, %v1369
        %v1378 = vsel %vm1362, %v1351, %v1370
        %v1379 = vsel %vm1363, %v1353, %v1371
        %v1380 = vsel %vm1364, %v1355, %v1372
        %v1381 = vsel %vm1365, %v1357, %v1373
        %v1382 = vmul.f32 %v1191, %v1374
        %v1383 = vmul.f32 %v1193, %v1375
        %v1384 = vmul.f32 %v1195, %v1376
        %v1385 = vmul.f32 %v1197, %v1377
        %v1386 = vmul.f32 %v1199, %v1378
        %v1387 = vmul.f32 %v1201, %v1379
        %v1388 = vmul.f32 %v1203, %v1380
        %v1389 = vmul.f32 %v1205, %v1381
        %v1390 = vrot.slane %v1382, 4
        %v1391 = vadd.f32 %v1382, %v1390
        %v1392 = vrot.slane %v1391, 2
        %v1393 = vadd.f32 %v1391, %v1392
        %v1394 = vrot.slane %v1393, 1
        %v1395 = vadd.f32 %v1393, %v1394
        %v1396 = vrot.slane %v1383, 4
        %v1397 = vadd.f32 %v1383, %v1396
        %v1398 = vrot.slane %v1397, 2
        %v1399 = vadd.f32 %v1397, %v1398
        %v1400 = vrot.slane %v1399, 1
        %v1401 = vadd.f32 %v1399, %v1400
        %v1402 = vrot.slane %v1384, 4
        %v1403 = vadd.f32 %v1384, %v1402
        %v1404 = vrot.slane %v1403, 2
        %v1405 = vadd.f32 %v1403, %v1404
        %v1406 = vrot.slane %v1405, 1
        %v1407 = vadd.f32 %v1405, %v1406
        %v1408 = vrot.slane %v1385, 4
        %v1409 = vadd.f32 %v1385, %v1408
        %v1410 = vrot.slane %v1409, 2
        %v1411 = vadd.f32 %v1409, %v1410
        %v1412 = vrot.slane %v1411, 1
        %v1413 = vadd.f32 %v1411, %v1412
        %v1414 = vrot.slane %v1386, 4
        %v1415 = vadd.f32 %v1386, %v1414
        %v1416 = vrot.slane %v1415, 2
        %v1417 = vadd.f32 %v1415, %v1416
        %v1418 = vrot.slane %v1417, 1
        %v1419 = vadd.f32 %v1417, %v1418
        %v1420 = vrot.slane %v1387, 4
        %v1421 = vadd.f32 %v1387, %v1420
        %v1422 = vrot.slane %v1421, 2
        %v1423 = vadd.f32 %v1421, %v1422
        %v1424 = vrot.slane %v1423, 1
        %v1425 = vadd.f32 %v1423, %v1424
        %v1426 = vrot.slane %v1388, 4
        %v1427 = vadd.f32 %v1388, %v1426
        %v1428 = vrot.slane %v1427, 2
        %v1429 = vadd.f32 %v1427, %v1428
        %v1430 = vrot.slane %v1429, 1
        %v1431 = vadd.f32 %v1429, %v1430
        %v1432 = vrot.slane %v1389, 4
        %v1433 = vadd.f32 %v1389, %v1432
        %v1434 = vrot.slane %v1433, 2
        %v1435 = vadd.f32 %v1433, %v1434
        %v1436 = vrot.slane %v1435, 1
        %v1437 = vadd.f32 %v1435, %v1436
        %v1438 = vmul.f32 %v1191, %v1062
        %v1439 = vmul.f32 %v1193, %v1063
        %v1440 = vmul.f32 %v1195, %v1064
        %v1441 = vmul.f32 %v1197, %v1065
        %v1442 = vmul.f32 %v1199, %v1066
        %v1443 = vmul.f32 %v1201, %v1067
        %v1444 = vmul.f32 %v1203, %v1068
        %v1445 = vmul.f32 %v1205, %v1069
        %v1446 = vmul.f32 %v1438, %v1295
        %v1447 = vmul.f32 %v1439, %v1297
        %v1448 = vmul.f32 %v1440, %v1299
        %v1449 = vmul.f32 %v1441, %v1301
        %v1450 = vmul.f32 %v1442, %v1303
        %v1451 = vmul.f32 %v1443, %v1305
        %v1452 = vmul.f32 %v1444, %v1307
        %v1453 = vmul.f32 %v1445, %v1309
        %v1454 = vmul.f32 %v1343, %v1343
        %v1455 = vmul.f32 %v1345, %v1345
        %v1456 = vmul.f32 %v1347, %v1347
        %v1457 = vmul.f32 %v1349, %v1349
        %v1458 = vmul.f32 %v1351, %v1351
        %v1459 = vmul.f32 %v1353, %v1353
        %v1460 = vmul.f32 %v1355, %v1355
        %v1461 = vmul.f32 %v1357, %v1357
        %v1462 = vmul.f32 %v1446, %v1454
        %v1463 = vmul.f32 %v1447, %v1455
        %v1464 = vmul.f32 %v1448, %v1456
        %v1465 = vmul.f32 %v1449, %v1457
        %v1466 = vmul.f32 %v1450, %v1458
        %v1467 = vmul.f32 %v1451, %v1459
        %v1468 = vmul.f32 %v1452, %v1460
        %v1469 = vmul.f32 %v1453, %v1461
        %v1470 = vrot.slane %v1462, 4
        %v1471 = vadd.f32 %v1462, %v1470
        %v1472 = vrot.slane %v1471, 2
        %v1473 = vadd.f32 %v1471, %v1472
        %v1474 = vrot.slane %v1473, 1
        %v1475 = vadd.f32 %v1473, %v1474
        %v1476 = vrot.slane %v1463, 4
        %v1477 = vadd.f32 %v1463, %v1476
        %v1478 = vrot.slane %v1477, 2
        %v1479 = vadd.f32 %v1477, %v1478
        %v1480 = vrot.slane %v1479, 1
        %v1481 = vadd.f32 %v1479, %v1480
        %v1482 = vrot.slane %v1464, 4
        %v1483 = vadd.f32 %v1464, %v1482
        %v1484 = vrot.slane %v1483, 2
        %v1485 = vadd.f32 %v1483, %v1484
        %v1486 = vrot.slane %v1485, 1
        %v1487 = vadd.f32 %v1485, %v1486
        %v1488 = vrot.slane %v1465, 4
        %v1489 = vadd.f32 %v1465, %v1488
        %v1490 = vrot.slane %v1489, 2
        %v1491 = vadd.f32 %v1489, %v1490
        %v1492 = vrot.slane %v1491, 1
        %v1493 = vadd.f32 %v1491, %v1492
        %v1494 = vrot.slane %v1466, 4
        %v1495 = vadd.f32 %v1466, %v1494
        %v1496 = vrot.slane %v1495, 2
        %v1497 = vadd.f32 %v1495, %v1496
        %v1498 = vrot.slane %v1497, 1
        %v1499 = vadd.f32 %v1497, %v1498
        %v1500 = vrot.slane %v1467, 4
        %v1501 = vadd.f32 %v1467, %v1500
        %v1502 = vrot.slane %v1501, 2
        %v1503 = vadd.f32 %v1501, %v1502
        %v1504 = vrot.slane %v1503, 1
        %v1505 = vadd.f32 %v1503, %v1504
        %v1506 = vrot.slane %v1468, 4
        %v1507 = vadd.f32 %v1468, %v1506
        %v1508 = vrot.slane %v1507, 2
        %v1509 = vadd.f32 %v1507, %v1508
        %v1510 = vrot.slane %v1509, 1
        %v1511 = vadd.f32 %v1509, %v1510
        %v1512 = vrot.slane %v1469, 4
        %v1513 = vadd.f32 %v1469, %v1512
        %v1514 = vrot.slane %v1513, 2
        %v1515 = vadd.f32 %v1513, %v1514
        %v1516 = vrot.slane %v1515, 1
        %v1517 = vadd.f32 %v1515, %v1516
        %v1518 = vlog2.pop %v1475
        %v1519 = vmul.f32 %v1518, 0.6931472
        %v1520 = vlog2.pop %v1481
        %v1521 = vmul.f32 %v1520, 0.6931472
        %v1522 = vlog2.pop %v1487
        %v1523 = vmul.f32 %v1522, 0.6931472
        %v1524 = vlog2.pop %v1493
        %v1525 = vmul.f32 %v1524, 0.6931472
        %v1526 = vlog2.pop %v1499
        %v1527 = vmul.f32 %v1526, 0.6931472
        %v1528 = vlog2.pop %v1505
        %v1529 = vmul.f32 %v1528, 0.6931472
        %v1530 = vlog2.pop %v1511
        %v1531 = vmul.f32 %v1530, 0.6931472
        %v1532 = vlog2.pop %v1517
        %v1533 = vmul.f32 %v1532, 0.6931472
        %v1534 = vadd.f32 %v1243, %v1519
        %v1535 = vadd.f32 %v1249, %v1521
        %v1536 = vadd.f32 %v1255, %v1523
        %v1537 = vadd.f32 %v1261, %v1525
        %v1538 = vadd.f32 %v1267, %v1527
        %v1539 = vadd.f32 %v1273, %v1529
        %v1540 = vadd.f32 %v1279, %v1531
        %v1541 = vadd.f32 %v1285, %v1533
        %v1542 = vadd.f32 %v966, %v1534
        %v1543 = vadd.f32 %v967, %v1535
        %v1544 = vadd.f32 %v968, %v1536
        %v1545 = vadd.f32 %v969, %v1537
        %v1546 = vadd.f32 %v970, %v1538
        %v1547 = vadd.f32 %v971, %v1539
        %v1548 = vadd.f32 %v972, %v1540
        %v1549 = vadd.f32 %v973, %v1541
        %v1550 = vmul.f32 %v1395, 0.999999
        %v1551 = vmul.f32 %v1401, 0.999999
        %v1552 = vmul.f32 %v1407, 0.999999
        %v1553 = vmul.f32 %v1413, 0.999999
        %v1554 = vmul.f32 %v1419, 0.999999
        %v1555 = vmul.f32 %v1425, 0.999999
        %v1556 = vmul.f32 %v1431, 0.999999
        %v1557 = vmul.f32 %v1437, 0.999999
        %v1558 = vadd.f32 %v1550, 5e-07
        %v1559 = vadd.f32 %v1551, 5e-07
        %v1560 = vadd.f32 %v1552, 5e-07
        %v1561 = vadd.f32 %v1553, 5e-07
        %v1562 = vadd.f32 %v1554, 5e-07
        %v1563 = vadd.f32 %v1555, 5e-07
        %v1564 = vadd.f32 %v1556, 5e-07
        %v1565 = vadd.f32 %v1557, 5e-07
        %v1566 = vlog2.pop %v1558
        %v1567 = vmul.f32 %v1566, 0.6931472
        %v1568 = vlog2.pop %v1559
        %v1569 = vmul.f32 %v1568, 0.6931472
        %v1570 = vlog2.pop %v1560
        %v1571 = vmul.f32 %v1570, 0.6931472
        %v1572 = vlog2.pop %v1561
        %v1573 = vmul.f32 %v1572, 0.6931472
        %v1574 = vlog2.pop %v1562
        %v1575 = vmul.f32 %v1574, 0.6931472
        %v1576 = vlog2.pop %v1563
        %v1577 = vmul.f32 %v1576, 0.6931472
        %v1578 = vlog2.pop %v1564
        %v1579 = vmul.f32 %v1578, 0.6931472
        %v1580 = vlog2.pop %v1565
        %v1581 = vmul.f32 %v1580, 0.6931472
        %v1582 = vsub.f32 1.0, %v1558
        %v1583 = vsub.f32 1.0, %v1559
        %v1584 = vsub.f32 1.0, %v1560
        %v1585 = vsub.f32 1.0, %v1561
        %v1586 = vsub.f32 1.0, %v1562
        %v1587 = vsub.f32 1.0, %v1563
        %v1588 = vsub.f32 1.0, %v1564
        %v1589 = vsub.f32 1.0, %v1565
        %v1590 = vlog2.pop %v1582
        %v1591 = vmul.f32 %v1590, 0.6931472
        %v1592 = vlog2.pop %v1583
        %v1593 = vmul.f32 %v1592, 0.6931472
        %v1594 = vlog2.pop %v1584
        %v1595 = vmul.f32 %v1594, 0.6931472
        %v1596 = vlog2.pop %v1585
        %v1597 = vmul.f32 %v1596, 0.6931472
        %v1598 = vlog2.pop %v1586
        %v1599 = vmul.f32 %v1598, 0.6931472
        %v1600 = vlog2.pop %v1587
        %v1601 = vmul.f32 %v1600, 0.6931472
        %v1602 = vlog2.pop %v1588
        %v1603 = vmul.f32 %v1602, 0.6931472
        %v1604 = vlog2.pop %v1589
        %v1605 = vmul.f32 %v1604, 0.6931472
        %v1606 = vsub.f32 %v1567, %v1591
        %v1607 = vsub.f32 %v1569, %v1593
        %v1608 = vsub.f32 %v1571, %v1595
        %v1609 = vsub.f32 %v1573, %v1597
        %v1610 = vsub.f32 %v1575, %v1599
        %v1611 = vsub.f32 %v1577, %v1601
        %v1612 = vsub.f32 %v1579, %v1603
        %v1613 = vsub.f32 %v1581, %v1605
        %v1614 = vadd.f32 %v1567, %v1591
        %v1615 = vadd.f32 %v1569, %v1593
        %v1616 = vadd.f32 %v1571, %v1595
        %v1617 = vadd.f32 %v1573, %v1597
        %v1618 = vadd.f32 %v1575, %v1599
        %v1619 = vadd.f32 %v1577, %v1601
        %v1620 = vadd.f32 %v1579, %v1603
        %v1621 = vadd.f32 %v1581, %v1605
        %v1622 = vsub.f32 -1.0000005e-06, %v1614
        %v1623 = vsub.f32 -1.0000005e-06, %v1615
        %v1624 = vsub.f32 -1.0000005e-06, %v1616
        %v1625 = vsub.f32 -1.0000005e-06, %v1617
        %v1626 = vsub.f32 -1.0000005e-06, %v1618
        %v1627 = vsub.f32 -1.0000005e-06, %v1619
        %v1628 = vsub.f32 -1.0000005e-06, %v1620
        %v1629 = vsub.f32 -1.0000005e-06, %v1621
        %v1630 = vadd.f32 %v1542, %v1622
        %v1631 = vadd.f32 %v1543, %v1623
        %v1632 = vadd.f32 %v1544, %v1624
        %v1633 = vadd.f32 %v1545, %v1625
        %v1634 = vadd.f32 %v1546, %v1626
        %v1635 = vadd.f32 %v1547, %v1627
        %v1636 = vadd.f32 %v1548, %v1628
        %v1637 = vadd.f32 %v1549, %v1629
        %v1638 = vld [vmem:[%s220 + $0x180] sm:$0xff]
        %v1639 = vld [vmem:[%s220 + $0x188] sm:$0xff]
        %v1640 = vld [vmem:[%s220 + $0x190] sm:$0xff]
        %v1641 = vld [vmem:[%s220 + $0x198] sm:$0xff]
        %v1642 = vld [vmem:[%s220 + $0x1a0] sm:$0xff]
        %v1643 = vld [vmem:[%s220 + $0x1a8] sm:$0xff]
        %v1644 = vld [vmem:[%s220 + $0x1b0] sm:$0xff]
        %v1645 = vld [vmem:[%s220 + $0x1b8] sm:$0xff]
        %v1646 = vld [vmem:[%s220 + $0x1c0] sm:$0xff]
        %v1647 = vld [vmem:[%s220 + $0x1c8] sm:$0xff]
        %v1648 = vld [vmem:[%s220 + $0x1d0] sm:$0xff]
        %v1649 = vld [vmem:[%s220 + $0x1d8] sm:$0xff]
        %v1650 = vld [vmem:[%s220 + $0x1e0] sm:$0xff]
        %v1651 = vld [vmem:[%s220 + $0x1e8] sm:$0xff]
        %v1652 = vld [vmem:[%s220 + $0x1f0] sm:$0xff]
        %v1653 = vld [vmem:[%s220 + $0x1f8] sm:$0xff]
        %v1654 = vld [vmem:[%s220 + $0x200] sm:$0xff]
        %v1655 = vld [vmem:[%s220 + $0x208] sm:$0xff]
        %v1656 = vld [vmem:[%s220 + $0x210] sm:$0xff]
        %v1657 = vld [vmem:[%s220 + $0x218] sm:$0xff]
        %v1658 = vld [vmem:[%s220 + $0x220] sm:$0xff]
        %v1659 = vld [vmem:[%s220 + $0x228] sm:$0xff]
        %v1660 = vld [vmem:[%s220 + $0x230] sm:$0xff]
        %v1661 = vld [vmem:[%s220 + $0x238] sm:$0xff]
        %v1662 = vmax.f32 %v1638, 0.0
        %v1663 = vmax.f32 %v1639, 0.0
        %v1664 = vmax.f32 %v1640, 0.0
        %v1665 = vmax.f32 %v1641, 0.0
        %v1666 = vmax.f32 %v1642, 0.0
        %v1667 = vmax.f32 %v1643, 0.0
        %v1668 = vmax.f32 %v1644, 0.0
        %v1669 = vmax.f32 %v1645, 0.0
        %v1670 = vand.u32 2147483647, %v1638
        %v1671 = vand.u32 2147483647, %v1639
        %v1672 = vand.u32 2147483647, %v1640
        %v1673 = vand.u32 2147483647, %v1641
        %v1674 = vand.u32 2147483647, %v1642
        %v1675 = vand.u32 2147483647, %v1643
        %v1676 = vand.u32 2147483647, %v1644
        %v1677 = vand.u32 2147483647, %v1645
        %v1678 = vsub.f32 0.0, %v1670
        %v1679 = vsub.f32 0.0, %v1671
        %v1680 = vsub.f32 0.0, %v1672
        %v1681 = vsub.f32 0.0, %v1673
        %v1682 = vsub.f32 0.0, %v1674
        %v1683 = vsub.f32 0.0, %v1675
        %v1684 = vsub.f32 0.0, %v1676
        %v1685 = vsub.f32 0.0, %v1677
        %v1686 = vmul.f32 %v1678, 1.442695
        %v1687 = vpow.pop %v1686
        %v1688 = vmul.f32 %v1679, 1.442695
        %v1689 = vpow.pop %v1688
        %v1690 = vmul.f32 %v1680, 1.442695
        %v1691 = vpow.pop %v1690
        %v1692 = vmul.f32 %v1681, 1.442695
        %v1693 = vpow.pop %v1692
        %v1694 = vmul.f32 %v1682, 1.442695
        %v1695 = vpow.pop %v1694
        %v1696 = vmul.f32 %v1683, 1.442695
        %v1697 = vpow.pop %v1696
        %v1698 = vmul.f32 %v1684, 1.442695
        %v1699 = vpow.pop %v1698
        %v1700 = vmul.f32 %v1685, 1.442695
        %v1701 = vpow.pop %v1700
        %v1702 = vadd.f32 %v1687, 1.0
        %v1703 = vadd.f32 %v1689, 1.0
        %v1704 = vadd.f32 %v1691, 1.0
        %v1705 = vadd.f32 %v1693, 1.0
        %v1706 = vadd.f32 %v1695, 1.0
        %v1707 = vadd.f32 %v1697, 1.0
        %v1708 = vadd.f32 %v1699, 1.0
        %v1709 = vadd.f32 %v1701, 1.0
        %v1710 = vlog2.pop %v1702
        %v1711 = vmul.f32 %v1710, 0.6931472
        %v1712 = vlog2.pop %v1703
        %v1713 = vmul.f32 %v1712, 0.6931472
        %v1714 = vlog2.pop %v1704
        %v1715 = vmul.f32 %v1714, 0.6931472
        %v1716 = vlog2.pop %v1705
        %v1717 = vmul.f32 %v1716, 0.6931472
        %v1718 = vlog2.pop %v1706
        %v1719 = vmul.f32 %v1718, 0.6931472
        %v1720 = vlog2.pop %v1707
        %v1721 = vmul.f32 %v1720, 0.6931472
        %v1722 = vlog2.pop %v1708
        %v1723 = vmul.f32 %v1722, 0.6931472
        %v1724 = vlog2.pop %v1709
        %v1725 = vmul.f32 %v1724, 0.6931472
        %v1726 = vadd.f32 %v1662, %v1711
        %v1727 = vadd.f32 %v1663, %v1713
        %v1728 = vadd.f32 %v1664, %v1715
        %v1729 = vadd.f32 %v1665, %v1717
        %v1730 = vadd.f32 %v1666, %v1719
        %v1731 = vadd.f32 %v1667, %v1721
        %v1732 = vadd.f32 %v1668, %v1723
        %v1733 = vadd.f32 %v1669, %v1725
        %v1734 = vrot.slane %v1654, 4
        %v1735 = vmax.f32 %v1654, %v1734
        %v1736 = vrot.slane %v1735, 2
        %v1737 = vmax.f32 %v1735, %v1736
        %v1738 = vrot.slane %v1737, 1
        %v1739 = vmax.f32 %v1737, %v1738
        %v1740 = vrot.slane %v1655, 4
        %v1741 = vmax.f32 %v1655, %v1740
        %v1742 = vrot.slane %v1741, 2
        %v1743 = vmax.f32 %v1741, %v1742
        %v1744 = vrot.slane %v1743, 1
        %v1745 = vmax.f32 %v1743, %v1744
        %v1746 = vrot.slane %v1656, 4
        %v1747 = vmax.f32 %v1656, %v1746
        %v1748 = vrot.slane %v1747, 2
        %v1749 = vmax.f32 %v1747, %v1748
        %v1750 = vrot.slane %v1749, 1
        %v1751 = vmax.f32 %v1749, %v1750
        %v1752 = vrot.slane %v1657, 4
        %v1753 = vmax.f32 %v1657, %v1752
        %v1754 = vrot.slane %v1753, 2
        %v1755 = vmax.f32 %v1753, %v1754
        %v1756 = vrot.slane %v1755, 1
        %v1757 = vmax.f32 %v1755, %v1756
        %v1758 = vrot.slane %v1658, 4
        %v1759 = vmax.f32 %v1658, %v1758
        %v1760 = vrot.slane %v1759, 2
        %v1761 = vmax.f32 %v1759, %v1760
        %v1762 = vrot.slane %v1761, 1
        %v1763 = vmax.f32 %v1761, %v1762
        %v1764 = vrot.slane %v1659, 4
        %v1765 = vmax.f32 %v1659, %v1764
        %v1766 = vrot.slane %v1765, 2
        %v1767 = vmax.f32 %v1765, %v1766
        %v1768 = vrot.slane %v1767, 1
        %v1769 = vmax.f32 %v1767, %v1768
        %v1770 = vrot.slane %v1660, 4
        %v1771 = vmax.f32 %v1660, %v1770
        %v1772 = vrot.slane %v1771, 2
        %v1773 = vmax.f32 %v1771, %v1772
        %v1774 = vrot.slane %v1773, 1
        %v1775 = vmax.f32 %v1773, %v1774
        %v1776 = vrot.slane %v1661, 4
        %v1777 = vmax.f32 %v1661, %v1776
        %v1778 = vrot.slane %v1777, 2
        %v1779 = vmax.f32 %v1777, %v1778
        %v1780 = vrot.slane %v1779, 1
        %v1781 = vmax.f32 %v1779, %v1780
        %v1782 = vsub.f32 %v1654, %v1739
        %v1783 = vsub.f32 %v1655, %v1745
        %v1784 = vsub.f32 %v1656, %v1751
        %v1785 = vsub.f32 %v1657, %v1757
        %v1786 = vsub.f32 %v1658, %v1763
        %v1787 = vsub.f32 %v1659, %v1769
        %v1788 = vsub.f32 %v1660, %v1775
        %v1789 = vsub.f32 %v1661, %v1781
        %v1790 = vmul.f32 %v1782, 1.442695
        %v1791 = vpow.pop %v1790
        %v1792 = vmul.f32 %v1783, 1.442695
        %v1793 = vpow.pop %v1792
        %v1794 = vmul.f32 %v1784, 1.442695
        %v1795 = vpow.pop %v1794
        %v1796 = vmul.f32 %v1785, 1.442695
        %v1797 = vpow.pop %v1796
        %v1798 = vmul.f32 %v1786, 1.442695
        %v1799 = vpow.pop %v1798
        %v1800 = vmul.f32 %v1787, 1.442695
        %v1801 = vpow.pop %v1800
        %v1802 = vmul.f32 %v1788, 1.442695
        %v1803 = vpow.pop %v1802
        %v1804 = vmul.f32 %v1789, 1.442695
        %v1805 = vpow.pop %v1804
        %v1806 = vrot.slane %v1791, 4
        %v1807 = vadd.f32 %v1791, %v1806
        %v1808 = vrot.slane %v1807, 2
        %v1809 = vadd.f32 %v1807, %v1808
        %v1810 = vrot.slane %v1809, 1
        %v1811 = vadd.f32 %v1809, %v1810
        %v1812 = vrot.slane %v1793, 4
        %v1813 = vadd.f32 %v1793, %v1812
        %v1814 = vrot.slane %v1813, 2
        %v1815 = vadd.f32 %v1813, %v1814
        %v1816 = vrot.slane %v1815, 1
        %v1817 = vadd.f32 %v1815, %v1816
        %v1818 = vrot.slane %v1795, 4
        %v1819 = vadd.f32 %v1795, %v1818
        %v1820 = vrot.slane %v1819, 2
        %v1821 = vadd.f32 %v1819, %v1820
        %v1822 = vrot.slane %v1821, 1
        %v1823 = vadd.f32 %v1821, %v1822
        %v1824 = vrot.slane %v1797, 4
        %v1825 = vadd.f32 %v1797, %v1824
        %v1826 = vrot.slane %v1825, 2
        %v1827 = vadd.f32 %v1825, %v1826
        %v1828 = vrot.slane %v1827, 1
        %v1829 = vadd.f32 %v1827, %v1828
        %v1830 = vrot.slane %v1799, 4
        %v1831 = vadd.f32 %v1799, %v1830
        %v1832 = vrot.slane %v1831, 2
        %v1833 = vadd.f32 %v1831, %v1832
        %v1834 = vrot.slane %v1833, 1
        %v1835 = vadd.f32 %v1833, %v1834
        %v1836 = vrot.slane %v1801, 4
        %v1837 = vadd.f32 %v1801, %v1836
        %v1838 = vrot.slane %v1837, 2
        %v1839 = vadd.f32 %v1837, %v1838
        %v1840 = vrot.slane %v1839, 1
        %v1841 = vadd.f32 %v1839, %v1840
        %v1842 = vrot.slane %v1803, 4
        %v1843 = vadd.f32 %v1803, %v1842
        %v1844 = vrot.slane %v1843, 2
        %v1845 = vadd.f32 %v1843, %v1844
        %v1846 = vrot.slane %v1845, 1
        %v1847 = vadd.f32 %v1845, %v1846
        %v1848 = vrot.slane %v1805, 4
        %v1849 = vadd.f32 %v1805, %v1848
        %v1850 = vrot.slane %v1849, 2
        %v1851 = vadd.f32 %v1849, %v1850
        %v1852 = vrot.slane %v1851, 1
        %v1853 = vadd.f32 %v1851, %v1852
        %v1854 = vrcp.pop %v1811
        %v1855 = vmul.f32 %v1791, %v1854
        %v1856 = vrcp.pop %v1817
        %v1857 = vmul.f32 %v1793, %v1856
        %v1858 = vrcp.pop %v1823
        %v1859 = vmul.f32 %v1795, %v1858
        %v1860 = vrcp.pop %v1829
        %v1861 = vmul.f32 %v1797, %v1860
        %v1862 = vrcp.pop %v1835
        %v1863 = vmul.f32 %v1799, %v1862
        %v1864 = vrcp.pop %v1841
        %v1865 = vmul.f32 %v1801, %v1864
        %v1866 = vrcp.pop %v1847
        %v1867 = vmul.f32 %v1803, %v1866
        %v1868 = vrcp.pop %v1853
        %v1869 = vmul.f32 %v1805, %v1868
        %v1870 = vmul.f32 %v1726, %v1606
        %v1871 = vmul.f32 %v1727, %v1607
        %v1872 = vmul.f32 %v1728, %v1608
        %v1873 = vmul.f32 %v1729, %v1609
        %v1874 = vmul.f32 %v1730, %v1610
        %v1875 = vmul.f32 %v1731, %v1611
        %v1876 = vmul.f32 %v1732, %v1612
        %v1877 = vmul.f32 %v1733, %v1613
        %v1878 = vadd.f32 %v1870, %v1646
        %v1879 = vadd.f32 %v1871, %v1647
        %v1880 = vadd.f32 %v1872, %v1648
        %v1881 = vadd.f32 %v1873, %v1649
        %v1882 = vadd.f32 %v1874, %v1650
        %v1883 = vadd.f32 %v1875, %v1651
        %v1884 = vadd.f32 %v1876, %v1652
        %v1885 = vadd.f32 %v1877, %v1653
        %v1886 = vand.u32 2147483647, %v1878
        %v1887 = vand.u32 2147483647, %v1879
        %v1888 = vand.u32 2147483647, %v1880
        %v1889 = vand.u32 2147483647, %v1881
        %v1890 = vand.u32 2147483647, %v1882
        %v1891 = vand.u32 2147483647, %v1883
        %v1892 = vand.u32 2147483647, %v1884
        %v1893 = vand.u32 2147483647, %v1885
        %v1894 = vsub.f32 0.0, %v1886
        %v1895 = vsub.f32 0.0, %v1887
        %v1896 = vsub.f32 0.0, %v1888
        %v1897 = vsub.f32 0.0, %v1889
        %v1898 = vsub.f32 0.0, %v1890
        %v1899 = vsub.f32 0.0, %v1891
        %v1900 = vsub.f32 0.0, %v1892
        %v1901 = vsub.f32 0.0, %v1893
        %v1902 = vrot.slane %v1894, 4
        %v1903 = vmax.f32 %v1894, %v1902
        %v1904 = vrot.slane %v1903, 2
        %v1905 = vmax.f32 %v1903, %v1904
        %v1906 = vrot.slane %v1905, 1
        %v1907 = vmax.f32 %v1905, %v1906
        %v1908 = vrot.slane %v1895, 4
        %v1909 = vmax.f32 %v1895, %v1908
        %v1910 = vrot.slane %v1909, 2
        %v1911 = vmax.f32 %v1909, %v1910
        %v1912 = vrot.slane %v1911, 1
        %v1913 = vmax.f32 %v1911, %v1912
        %v1914 = vrot.slane %v1896, 4
        %v1915 = vmax.f32 %v1896, %v1914
        %v1916 = vrot.slane %v1915, 2
        %v1917 = vmax.f32 %v1915, %v1916
        %v1918 = vrot.slane %v1917, 1
        %v1919 = vmax.f32 %v1917, %v1918
        %v1920 = vrot.slane %v1897, 4
        %v1921 = vmax.f32 %v1897, %v1920
        %v1922 = vrot.slane %v1921, 2
        %v1923 = vmax.f32 %v1921, %v1922
        %v1924 = vrot.slane %v1923, 1
        %v1925 = vmax.f32 %v1923, %v1924
        %v1926 = vrot.slane %v1898, 4
        %v1927 = vmax.f32 %v1898, %v1926
        %v1928 = vrot.slane %v1927, 2
        %v1929 = vmax.f32 %v1927, %v1928
        %v1930 = vrot.slane %v1929, 1
        %v1931 = vmax.f32 %v1929, %v1930
        %v1932 = vrot.slane %v1899, 4
        %v1933 = vmax.f32 %v1899, %v1932
        %v1934 = vrot.slane %v1933, 2
        %v1935 = vmax.f32 %v1933, %v1934
        %v1936 = vrot.slane %v1935, 1
        %v1937 = vmax.f32 %v1935, %v1936
        %v1938 = vrot.slane %v1900, 4
        %v1939 = vmax.f32 %v1900, %v1938
        %v1940 = vrot.slane %v1939, 2
        %v1941 = vmax.f32 %v1939, %v1940
        %v1942 = vrot.slane %v1941, 1
        %v1943 = vmax.f32 %v1941, %v1942
        %v1944 = vrot.slane %v1901, 4
        %v1945 = vmax.f32 %v1901, %v1944
        %v1946 = vrot.slane %v1945, 2
        %v1947 = vmax.f32 %v1945, %v1946
        %v1948 = vrot.slane %v1947, 1
        %v1949 = vmax.f32 %v1947, %v1948
        %v1950 = vsub.f32 %v1894, %v1907
        %v1951 = vsub.f32 %v1895, %v1913
        %v1952 = vsub.f32 %v1896, %v1919
        %v1953 = vsub.f32 %v1897, %v1925
        %v1954 = vsub.f32 %v1898, %v1931
        %v1955 = vsub.f32 %v1899, %v1937
        %v1956 = vsub.f32 %v1900, %v1943
        %v1957 = vsub.f32 %v1901, %v1949
        %v1958 = vmul.f32 %v1950, 1.442695
        %v1959 = vpow.pop %v1958
        %v1960 = vmul.f32 %v1951, 1.442695
        %v1961 = vpow.pop %v1960
        %v1962 = vmul.f32 %v1952, 1.442695
        %v1963 = vpow.pop %v1962
        %v1964 = vmul.f32 %v1953, 1.442695
        %v1965 = vpow.pop %v1964
        %v1966 = vmul.f32 %v1954, 1.442695
        %v1967 = vpow.pop %v1966
        %v1968 = vmul.f32 %v1955, 1.442695
        %v1969 = vpow.pop %v1968
        %v1970 = vmul.f32 %v1956, 1.442695
        %v1971 = vpow.pop %v1970
        %v1972 = vmul.f32 %v1957, 1.442695
        %v1973 = vpow.pop %v1972
        %v1974 = vmul.f32 %v1907, 1.442695
        %v1975 = vpow.pop %v1974
        %v1976 = vmul.f32 %v1913, 1.442695
        %v1977 = vpow.pop %v1976
        %v1978 = vmul.f32 %v1919, 1.442695
        %v1979 = vpow.pop %v1978
        %v1980 = vmul.f32 %v1925, 1.442695
        %v1981 = vpow.pop %v1980
        %v1982 = vmul.f32 %v1931, 1.442695
        %v1983 = vpow.pop %v1982
        %v1984 = vmul.f32 %v1937, 1.442695
        %v1985 = vpow.pop %v1984
        %v1986 = vmul.f32 %v1943, 1.442695
        %v1987 = vpow.pop %v1986
        %v1988 = vmul.f32 %v1949, 1.442695
        %v1989 = vpow.pop %v1988
        %v1990 = vmul.f32 %v1959, %v1975
        %v1991 = vmul.f32 %v1961, %v1977
        %v1992 = vmul.f32 %v1963, %v1979
        %v1993 = vmul.f32 %v1965, %v1981
        %v1994 = vmul.f32 %v1967, %v1983
        %v1995 = vmul.f32 %v1969, %v1985
        %v1996 = vmul.f32 %v1971, %v1987
        %v1997 = vmul.f32 %v1973, %v1989
        %v1998 = vadd.f32 %v1990, 1.0
        %v1999 = vadd.f32 %v1991, 1.0
        %v2000 = vadd.f32 %v1992, 1.0
        %v2001 = vadd.f32 %v1993, 1.0
        %v2002 = vadd.f32 %v1994, 1.0
        %v2003 = vadd.f32 %v1995, 1.0
        %v2004 = vadd.f32 %v1996, 1.0
        %v2005 = vadd.f32 %v1997, 1.0
        %v2006 = vrcp.pop %v1998
        %v2007 = vmul.f32 1.0, %v2006
        %v2008 = vrcp.pop %v1999
        %v2009 = vmul.f32 1.0, %v2008
        %v2010 = vrcp.pop %v2000
        %v2011 = vmul.f32 1.0, %v2010
        %v2012 = vrcp.pop %v2001
        %v2013 = vmul.f32 1.0, %v2012
        %v2014 = vrcp.pop %v2002
        %v2015 = vmul.f32 1.0, %v2014
        %v2016 = vrcp.pop %v2003
        %v2017 = vmul.f32 1.0, %v2016
        %v2018 = vrcp.pop %v2004
        %v2019 = vmul.f32 1.0, %v2018
        %v2020 = vrcp.pop %v2005
        %v2021 = vmul.f32 1.0, %v2020
        %vm2022 = vcmp.ge.f32.partialorder %v1878, 0.0
        %vm2023 = vcmp.ge.f32.partialorder %v1879, 0.0
        %vm2024 = vcmp.ge.f32.partialorder %v1880, 0.0
        %vm2025 = vcmp.ge.f32.partialorder %v1881, 0.0
        %vm2026 = vcmp.ge.f32.partialorder %v1882, 0.0
        %vm2027 = vcmp.ge.f32.partialorder %v1883, 0.0
        %vm2028 = vcmp.ge.f32.partialorder %v1884, 0.0
        %vm2029 = vcmp.ge.f32.partialorder %v1885, 0.0
        %v2030 = vsub.f32 1.0, %v2007
        %v2031 = vsub.f32 1.0, %v2009
        %v2032 = vsub.f32 1.0, %v2011
        %v2033 = vsub.f32 1.0, %v2013
        %v2034 = vsub.f32 1.0, %v2015
        %v2035 = vsub.f32 1.0, %v2017
        %v2036 = vsub.f32 1.0, %v2019
        %v2037 = vsub.f32 1.0, %v2021
        %v2038 = vsel %vm2022, %v2007, %v2030
        %v2039 = vsel %vm2023, %v2009, %v2031
        %v2040 = vsel %vm2024, %v2011, %v2032
        %v2041 = vsel %vm2025, %v2013, %v2033
        %v2042 = vsel %vm2026, %v2015, %v2034
        %v2043 = vsel %vm2027, %v2017, %v2035
        %v2044 = vsel %vm2028, %v2019, %v2036
        %v2045 = vsel %vm2029, %v2021, %v2037
        %v2046 = vmul.f32 %v1855, %v2038
        %v2047 = vmul.f32 %v1857, %v2039
        %v2048 = vmul.f32 %v1859, %v2040
        %v2049 = vmul.f32 %v1861, %v2041
        %v2050 = vmul.f32 %v1863, %v2042
        %v2051 = vmul.f32 %v1865, %v2043
        %v2052 = vmul.f32 %v1867, %v2044
        %v2053 = vmul.f32 %v1869, %v2045
        %v2054 = vrot.slane %v2046, 4
        %v2055 = vadd.f32 %v2046, %v2054
        %v2056 = vrot.slane %v2055, 2
        %v2057 = vadd.f32 %v2055, %v2056
        %v2058 = vrot.slane %v2057, 1
        %v2059 = vadd.f32 %v2057, %v2058
        %v2060 = vrot.slane %v2047, 4
        %v2061 = vadd.f32 %v2047, %v2060
        %v2062 = vrot.slane %v2061, 2
        %v2063 = vadd.f32 %v2061, %v2062
        %v2064 = vrot.slane %v2063, 1
        %v2065 = vadd.f32 %v2063, %v2064
        %v2066 = vrot.slane %v2048, 4
        %v2067 = vadd.f32 %v2048, %v2066
        %v2068 = vrot.slane %v2067, 2
        %v2069 = vadd.f32 %v2067, %v2068
        %v2070 = vrot.slane %v2069, 1
        %v2071 = vadd.f32 %v2069, %v2070
        %v2072 = vrot.slane %v2049, 4
        %v2073 = vadd.f32 %v2049, %v2072
        %v2074 = vrot.slane %v2073, 2
        %v2075 = vadd.f32 %v2073, %v2074
        %v2076 = vrot.slane %v2075, 1
        %v2077 = vadd.f32 %v2075, %v2076
        %v2078 = vrot.slane %v2050, 4
        %v2079 = vadd.f32 %v2050, %v2078
        %v2080 = vrot.slane %v2079, 2
        %v2081 = vadd.f32 %v2079, %v2080
        %v2082 = vrot.slane %v2081, 1
        %v2083 = vadd.f32 %v2081, %v2082
        %v2084 = vrot.slane %v2051, 4
        %v2085 = vadd.f32 %v2051, %v2084
        %v2086 = vrot.slane %v2085, 2
        %v2087 = vadd.f32 %v2085, %v2086
        %v2088 = vrot.slane %v2087, 1
        %v2089 = vadd.f32 %v2087, %v2088
        %v2090 = vrot.slane %v2052, 4
        %v2091 = vadd.f32 %v2052, %v2090
        %v2092 = vrot.slane %v2091, 2
        %v2093 = vadd.f32 %v2091, %v2092
        %v2094 = vrot.slane %v2093, 1
        %v2095 = vadd.f32 %v2093, %v2094
        %v2096 = vrot.slane %v2053, 4
        %v2097 = vadd.f32 %v2053, %v2096
        %v2098 = vrot.slane %v2097, 2
        %v2099 = vadd.f32 %v2097, %v2098
        %v2100 = vrot.slane %v2099, 1
        %v2101 = vadd.f32 %v2099, %v2100
        %v2102 = vmul.f32 %v1855, %v1726
        %v2103 = vmul.f32 %v1857, %v1727
        %v2104 = vmul.f32 %v1859, %v1728
        %v2105 = vmul.f32 %v1861, %v1729
        %v2106 = vmul.f32 %v1863, %v1730
        %v2107 = vmul.f32 %v1865, %v1731
        %v2108 = vmul.f32 %v1867, %v1732
        %v2109 = vmul.f32 %v1869, %v1733
        %v2110 = vmul.f32 %v2102, %v1959
        %v2111 = vmul.f32 %v2103, %v1961
        %v2112 = vmul.f32 %v2104, %v1963
        %v2113 = vmul.f32 %v2105, %v1965
        %v2114 = vmul.f32 %v2106, %v1967
        %v2115 = vmul.f32 %v2107, %v1969
        %v2116 = vmul.f32 %v2108, %v1971
        %v2117 = vmul.f32 %v2109, %v1973
        %v2118 = vmul.f32 %v2007, %v2007
        %v2119 = vmul.f32 %v2009, %v2009
        %v2120 = vmul.f32 %v2011, %v2011
        %v2121 = vmul.f32 %v2013, %v2013
        %v2122 = vmul.f32 %v2015, %v2015
        %v2123 = vmul.f32 %v2017, %v2017
        %v2124 = vmul.f32 %v2019, %v2019
        %v2125 = vmul.f32 %v2021, %v2021
        %v2126 = vmul.f32 %v2110, %v2118
        %v2127 = vmul.f32 %v2111, %v2119
        %v2128 = vmul.f32 %v2112, %v2120
        %v2129 = vmul.f32 %v2113, %v2121
        %v2130 = vmul.f32 %v2114, %v2122
        %v2131 = vmul.f32 %v2115, %v2123
        %v2132 = vmul.f32 %v2116, %v2124
        %v2133 = vmul.f32 %v2117, %v2125
        %v2134 = vrot.slane %v2126, 4
        %v2135 = vadd.f32 %v2126, %v2134
        %v2136 = vrot.slane %v2135, 2
        %v2137 = vadd.f32 %v2135, %v2136
        %v2138 = vrot.slane %v2137, 1
        %v2139 = vadd.f32 %v2137, %v2138
        %v2140 = vrot.slane %v2127, 4
        %v2141 = vadd.f32 %v2127, %v2140
        %v2142 = vrot.slane %v2141, 2
        %v2143 = vadd.f32 %v2141, %v2142
        %v2144 = vrot.slane %v2143, 1
        %v2145 = vadd.f32 %v2143, %v2144
        %v2146 = vrot.slane %v2128, 4
        %v2147 = vadd.f32 %v2128, %v2146
        %v2148 = vrot.slane %v2147, 2
        %v2149 = vadd.f32 %v2147, %v2148
        %v2150 = vrot.slane %v2149, 1
        %v2151 = vadd.f32 %v2149, %v2150
        %v2152 = vrot.slane %v2129, 4
        %v2153 = vadd.f32 %v2129, %v2152
        %v2154 = vrot.slane %v2153, 2
        %v2155 = vadd.f32 %v2153, %v2154
        %v2156 = vrot.slane %v2155, 1
        %v2157 = vadd.f32 %v2155, %v2156
        %v2158 = vrot.slane %v2130, 4
        %v2159 = vadd.f32 %v2130, %v2158
        %v2160 = vrot.slane %v2159, 2
        %v2161 = vadd.f32 %v2159, %v2160
        %v2162 = vrot.slane %v2161, 1
        %v2163 = vadd.f32 %v2161, %v2162
        %v2164 = vrot.slane %v2131, 4
        %v2165 = vadd.f32 %v2131, %v2164
        %v2166 = vrot.slane %v2165, 2
        %v2167 = vadd.f32 %v2165, %v2166
        %v2168 = vrot.slane %v2167, 1
        %v2169 = vadd.f32 %v2167, %v2168
        %v2170 = vrot.slane %v2132, 4
        %v2171 = vadd.f32 %v2132, %v2170
        %v2172 = vrot.slane %v2171, 2
        %v2173 = vadd.f32 %v2171, %v2172
        %v2174 = vrot.slane %v2173, 1
        %v2175 = vadd.f32 %v2173, %v2174
        %v2176 = vrot.slane %v2133, 4
        %v2177 = vadd.f32 %v2133, %v2176
        %v2178 = vrot.slane %v2177, 2
        %v2179 = vadd.f32 %v2177, %v2178
        %v2180 = vrot.slane %v2179, 1
        %v2181 = vadd.f32 %v2179, %v2180
        %v2182 = vlog2.pop %v2139
        %v2183 = vmul.f32 %v2182, 0.6931472
        %v2184 = vlog2.pop %v2145
        %v2185 = vmul.f32 %v2184, 0.6931472
        %v2186 = vlog2.pop %v2151
        %v2187 = vmul.f32 %v2186, 0.6931472
        %v2188 = vlog2.pop %v2157
        %v2189 = vmul.f32 %v2188, 0.6931472
        %v2190 = vlog2.pop %v2163
        %v2191 = vmul.f32 %v2190, 0.6931472
        %v2192 = vlog2.pop %v2169
        %v2193 = vmul.f32 %v2192, 0.6931472
        %v2194 = vlog2.pop %v2175
        %v2195 = vmul.f32 %v2194, 0.6931472
        %v2196 = vlog2.pop %v2181
        %v2197 = vmul.f32 %v2196, 0.6931472
        %v2198 = vadd.f32 %v1907, %v2183
        %v2199 = vadd.f32 %v1913, %v2185
        %v2200 = vadd.f32 %v1919, %v2187
        %v2201 = vadd.f32 %v1925, %v2189
        %v2202 = vadd.f32 %v1931, %v2191
        %v2203 = vadd.f32 %v1937, %v2193
        %v2204 = vadd.f32 %v1943, %v2195
        %v2205 = vadd.f32 %v1949, %v2197
        %v2206 = vadd.f32 %v1630, %v2198
        %v2207 = vadd.f32 %v1631, %v2199
        %v2208 = vadd.f32 %v1632, %v2200
        %v2209 = vadd.f32 %v1633, %v2201
        %v2210 = vadd.f32 %v1634, %v2202
        %v2211 = vadd.f32 %v1635, %v2203
        %v2212 = vadd.f32 %v1636, %v2204
        %v2213 = vadd.f32 %v1637, %v2205
        %vm2214 = vcmp.ne.f32.partialorder %v2059, %v2059
        %vm2215 = vcmp.ne.f32.partialorder %v2065, %v2065
        %vm2216 = vcmp.ne.f32.partialorder %v2071, %v2071
        %vm2217 = vcmp.ne.f32.partialorder %v2077, %v2077
        %vm2218 = vcmp.ne.f32.partialorder %v2083, %v2083
        %vm2219 = vcmp.ne.f32.partialorder %v2089, %v2089
        %vm2220 = vcmp.ne.f32.partialorder %v2095, %v2095
        %vm2221 = vcmp.ne.f32.partialorder %v2101, %v2101
        %v2222 = vsel %vm2214, 0.0, %v2059
        %v2223 = vsel %vm2215, 0.0, %v2065
        %v2224 = vsel %vm2216, 0.0, %v2071
        %v2225 = vsel %vm2217, 0.0, %v2077
        %v2226 = vsel %vm2218, 0.0, %v2083
        %v2227 = vsel %vm2219, 0.0, %v2089
        %v2228 = vsel %vm2220, 0.0, %v2095
        %v2229 = vsel %vm2221, 0.0, %v2101
        %v2238 = vcombine.low %v2222, %v2223
        %v2239 = vcombine.low %v2224, %v2225
        %v2240 = vcombine.low %v2226, %v2227
        %v2241 = vcombine.low %v2228, %v2229
        %v2243 = vunpack.c.l.s4 1966171168
        %v2244 = vunpack.c.0.s8 %v2243
        %v2245 = vlaneseq
        %v2246 = vshrl.u32 %v2245, 7
        %v2247 = vsub.s32 %v2244, %v2246
        %v2248 = vrot.slane %v2238, %v2247
        %v2250 = vunpack.c.l.s4 1966171168
        %v2251 = vunpack.c.0.s8 %v2250
        %v2252 = vlaneseq
        %v2253 = vshrl.u32 %v2252, 7
        %v2254 = vsub.s32 %v2251, %v2253
        %v2255 = vrot.slane %v2239, %v2254
        %v2257 = vunpack.c.l.s4 1966171168
        %v2258 = vunpack.c.0.s8 %v2257
        %v2259 = vlaneseq
        %v2260 = vshrl.u32 %v2259, 7
        %v2261 = vsub.s32 %v2258, %v2260
        %v2262 = vrot.slane %v2240, %v2261
        %v2264 = vunpack.c.l.s4 1966171168
        %v2265 = vunpack.c.0.s8 %v2264
        %v2266 = vlaneseq
        %v2267 = vshrl.u32 %v2266, 7
        %v2268 = vsub.s32 %v2265, %v2267
        %v2269 = vrot.slane %v2241, %v2268
        %v2270 = vcombine.low %v2248, %v2255
        %v2271 = vcombine.low %v2262, %v2269
        %v2273 = vunpack.c.l.s4 1966171168
        %v2274 = vunpack.c.0.s8 %v2273
        %v2275 = vlaneseq
        %v2276 = vshrl.u32 %v2275, 7
        %v2277 = vsub.s32 %v2274, %v2276
        %v2278 = vrot.slane %v2270, %v2277
        %v2280 = vunpack.c.l.s4 1966171168
        %v2281 = vunpack.c.0.s8 %v2280
        %v2282 = vlaneseq
        %v2283 = vshrl.u32 %v2282, 7
        %v2284 = vsub.s32 %v2281, %v2283
        %v2285 = vrot.slane %v2271, %v2284
        %v2286 = vcombine.low %v2278, %v2285
        %2288 = vst [vmem:[%s254] sm:$0xff] %v2286
        %v2297 = vcombine.low %v2206, %v2207
        %v2298 = vcombine.low %v2208, %v2209
        %v2299 = vcombine.low %v2210, %v2211
        %v2300 = vcombine.low %v2212, %v2213
        %v2302 = vunpack.c.l.s4 1966171168
        %v2303 = vunpack.c.0.s8 %v2302
        %v2304 = vlaneseq
        %v2305 = vshrl.u32 %v2304, 7
        %v2306 = vsub.s32 %v2303, %v2305
        %v2307 = vrot.slane %v2297, %v2306
        %v2309 = vunpack.c.l.s4 1966171168
        %v2310 = vunpack.c.0.s8 %v2309
        %v2311 = vlaneseq
        %v2312 = vshrl.u32 %v2311, 7
        %v2313 = vsub.s32 %v2310, %v2312
        %v2314 = vrot.slane %v2298, %v2313
        %v2316 = vunpack.c.l.s4 1966171168
        %v2317 = vunpack.c.0.s8 %v2316
        %v2318 = vlaneseq
        %v2319 = vshrl.u32 %v2318, 7
        %v2320 = vsub.s32 %v2317, %v2319
        %v2321 = vrot.slane %v2299, %v2320
        %v2323 = vunpack.c.l.s4 1966171168
        %v2324 = vunpack.c.0.s8 %v2323
        %v2325 = vlaneseq
        %v2326 = vshrl.u32 %v2325, 7
        %v2327 = vsub.s32 %v2324, %v2326
        %v2328 = vrot.slane %v2300, %v2327
        %v2329 = vcombine.low %v2307, %v2314
        %v2330 = vcombine.low %v2321, %v2328
        %v2332 = vunpack.c.l.s4 1966171168
        %v2333 = vunpack.c.0.s8 %v2332
        %v2334 = vlaneseq
        %v2335 = vshrl.u32 %v2334, 7
        %v2336 = vsub.s32 %v2333, %v2335
        %v2337 = vrot.slane %v2329, %v2336
        %v2339 = vunpack.c.l.s4 1966171168
        %v2340 = vunpack.c.0.s8 %v2339
        %v2341 = vlaneseq
        %v2342 = vshrl.u32 %v2341, 7
        %v2343 = vsub.s32 %v2340, %v2342
        %v2344 = vrot.slane %v2330, %v2343
        %v2345 = vcombine.low %v2337, %v2344
        %2347 = vst [vmem:[%s261] sm:$0xff] %v2345
        %s2348 = sand.u32 %s105, 1
        %s2349 = scalar_lea.sflag [#allocation4], %s2348
        %s2350 = sand.u32 %s105, 1
        %s2351 = smul.addr %s2350, 8
        %s2352 = scalar_lea.vmem [#allocation7], %s2351
        %s2353 = sand.u32 %s133, 1
        %s2354 = scalar_lea.sflag [#allocation9], %s2353
        %s2355 = sand.u32 %s133, 1
        %s2356 = smul.addr %s2355, 8
        %s2357 = scalar_lea.vmem [#allocation8], %s2356
        // Predicated region
        $region37: #{tpu_custom_call.1} parent=27 // pred_check
          %p2358 = pneg %p115
        $region38: #{tpu_custom_call.1} parent=27 // pred_check_branch
          %2360 = sbr.rel (%p2358) target = $region40
        $region39: #{tpu_custom_call.1} parent=27 // pred_region
          %s2361 = smul.u32 8, %s32
          %s2363 = ssub.s32 128, 128
          %2364 = vsyncadd %s2349, %s2363
          %s2365 = smul.addr %s31, 8
          %s2366 = sadd.s32 %s2361, %s2365
          %s2367 = smul.addr %s2366, 16
          %s2368 = scalar_lea.hbm %s2, %s2367
          %s2370 = sshll.u32 %s2352, 4
          %s2371 = int_to_ptr.vmem [resolvable:$true] %s2370
          %2373 = dma.vmem_to_hbm [thread:$0]  %s2371, 128, %s2368, %s2349
        $region40: #{tpu_custom_call.1} parent=27 // pred_fallthru
          _
        // Predicated region
        $region41: #{tpu_custom_call.1} parent=27 // pred_check
          %p2374 = pneg %p143
        $region42: #{tpu_custom_call.1} parent=27 // pred_check_branch
          %2376 = sbr.rel (%p2374) target = $region44
        $region43: #{tpu_custom_call.1} parent=27 // pred_region
          %s2377 = smul.u32 8, %s32
          %s2379 = ssub.s32 128, 128
          %2380 = vsyncadd %s2354, %s2379
          %s2381 = smul.addr %s31, 8
          %s2382 = sadd.s32 %s2377, %s2381
          %s2383 = smul.addr %s2382, 16
          %s2384 = scalar_lea.hbm %s3, %s2383
          %s2386 = sshll.u32 %s2357, 4
          %s2387 = int_to_ptr.vmem [resolvable:$true] %s2386
          %2389 = dma.vmem_to_hbm [thread:$0]  %s2387, 128, %s2384, %s2354
        $region44: #{tpu_custom_call.1} parent=27 // pred_fallthru
          _
      $region28: #{tpu_custom_call.1} parent=5 // pred_fallthru
        _
      %p2390 = scmp.le.s32.totalorder 2, %s22
      // Predicated region
      $region45: #{tpu_custom_call.1} parent=5 // pred_check
        %p2391 = pneg %p2390
      $region46: #{tpu_custom_call.1} parent=5 // pred_check_branch
        %2393 = sbr.rel (%p2391) target = $region48
      $region47: #{tpu_custom_call.1} parent=5 // pred_region
        %s2394 = ssub.s32 %s22, 2
        // Predicated region
        $region49: #{tpu_custom_call.1} parent=47 // pred_check
          %p2395 = pneg %p121
        $region50: #{tpu_custom_call.1} parent=47 // pred_check_branch
          %2397 = sbr.rel (%p2395) target = $region52
        $region51: #{tpu_custom_call.1} parent=47 // pred_region
          %s2398 = sand.u32 %s106, 1
          %s2399 = scalar_lea.sflag [#allocation4], %s2398
          %s2400 = sand.u32 %s106, 1
          %s2401 = smul.addr %s2400, 8
          %s2402 = scalar_lea.vmem [#allocation7], %s2401
          %2403 = dma.done %s2399, 128
        $region52: #{tpu_custom_call.1} parent=47 // pred_fallthru
          _
        // Predicated region
        $region53: #{tpu_custom_call.1} parent=47 // pred_check
          %p2404 = pneg %p149
        $region54: #{tpu_custom_call.1} parent=47 // pred_check_branch
          %2406 = sbr.rel (%p2404) target = $region56
        $region55: #{tpu_custom_call.1} parent=47 // pred_region
          %s2407 = sand.u32 %s134, 1
          %s2408 = scalar_lea.sflag [#allocation9], %s2407
          %s2409 = sand.u32 %s134, 1
          %s2410 = smul.addr %s2409, 8
          %s2411 = scalar_lea.vmem [#allocation8], %s2410
          %2412 = dma.done %s2408, 128
        $region56: #{tpu_custom_call.1} parent=47 // pred_fallthru
          _
      $region48: #{tpu_custom_call.1} parent=5 // pred_fallthru
        _
    $region6: #{tpu_custom_call.1} parent=1 // loop_footer
      %s26 = sadd.s32 1, %s22
    $region7: #{tpu_custom_call.1} parent=1 // loop_footer_branch
      %21 = sbr.rel target = $region3
    $region8: #{tpu_custom_call.1} parent=1 // loop_exit
      _
    %2413 = vsyncpa [#allocation3], 1
    %s2414 = scalar_lea.sflag [#allocation3], 1
    %2415 = vsyncpa %s2414, 1
    %2416 = vsyncpa [#allocation6], 1
    %s2417 = scalar_lea.sflag [#allocation6], 1
    %2418 = vsyncpa %s2417, 1
    %2419 = vsyncpa [#allocation4], 1
    %s2420 = scalar_lea.sflag [#allocation4], 1
    %2421 = vsyncpa %s2420, 1
    %2422 = vsyncpa [#allocation9], 1
    %s2423 = scalar_lea.sflag [#allocation9], 1
    %2424 = vsyncpa %s2423, 1

</llo_original>
